<compile_context>
chip_gen: v7x
topology: tpu7x:2x2x1
jax: 0.10.0
libtpu: 0.0.40
codegen_flags: <defaults>
</compile_context>

<pallas_src>
import jax
import jax.numpy as jnp
import numpy as np
from jax import lax
from jax.experimental import pallas as pl
from jax.experimental.pallas import tpu as pltpu

NUM_GROUPS = 16      # GroupNorm(16, nout)
EPS = 1e-5           # PyTorch GroupNorm default eps
NEG_SLOPE = 0.2      # LeakyReLU(0.2)
KH = KW = 3


def _round_up(x, m):
    return (x + m - 1) // m * m


def _make_kernel(stride, cin, Wph, l_out, n_valid, group_size, Bb):
    """Fused conv + GroupNorm + LeakyReLU kernel body (trace-time constants closed over)."""
    taps = []
    for kh in range(KH):
        for kw in range(KW):
            phase = (kh % stride) * stride + (kw % stride)
            off = (kh // stride) * Wph + (kw // stride)
            taps.append((kh * KW + kw, phase, off))

    cnt = float(n_valid)                   # valid spatial positions per channel
    inv_gcnt = 1.0 / float(n_valid * group_size)

    def kernel(x_ref, w_ref, b_ref, gamma_ref, beta_ref, A_ref, At_ref, mask_ref,
               out_ref, xcat_ref):
        # x_ref    : (Bb, s*s, cin, L_IN)  bf16  polyphase-flattened padded input
        # w_ref    : (Cb, 9*cin)           bf16  tap-concatenated conv weights (this split)
        # b/gamma/beta_ref : (Cb, 1)       f32
        # A_ref    : (Gb, Cb), At_ref : (Cb, Gb)  one-hot group aggregate / broadcast
        # mask_ref : (1, L_OUT)            f32   validity mask
        # out_ref  : (Bb, Cb, L_OUT)       f32
        # xcat_ref : (9*cin, L_OUT)        bf16  VMEM scratch (tap slab, rebuilt per image)
        w_cat = w_ref[...]
        mask = mask_ref[...]
        bb = b_ref[...]
        gamma = gamma_ref[...]
        beta = beta_ref[...]
        A = A_ref[...]
        At = At_ref[...]

        col_c = lax.broadcasted_iota(jnp.int32, (bb.shape[0], 2), 1)
        col_g = lax.broadcasted_iota(jnp.int32, (A.shape[0], 2), 1)

        for bi in range(Bb):
            # --- build (9*cin, L_OUT) tap slab from static ref slices (no full-phase loads) ---
            for t, ph, off in taps:
                xcat_ref[t * cin:(t + 1) * cin, :] = x_ref[bi, ph, :, off:off + l_out]

            # --- single MXU matmul, K = 9*cin, bf16 x bf16 -> f32 accumulate ---
            y = jnp.dot(w_cat, xcat_ref[...], preferred_element_type=jnp.float32)  # (Cb, L_OUT)

            # --- GroupNorm stats over valid positions only (conv bias folded analytically) ---
            ym = y * mask
            ch_sum = jnp.sum(ym, axis=1, keepdims=True)          # (Cb, 1)
            ch_sq = jnp.sum(ym * y, axis=1, keepdims=True)       # (Cb, 1)
            ch_sum_b = ch_sum + bb * cnt                         # stats of (conv + bias)
            ch_sq_b = ch_sq + 2.0 * bb * ch_sum + bb * bb * cnt
            stats_c = jnp.where(col_c == 0, ch_sum_b, ch_sq_b)   # (Cb, 2): [sum, sumsq]

            # merged aggregation: one dot down to groups, one dot back to channels
            g_stats = jnp.dot(A, stats_c, preferred_element_type=jnp.float32) * inv_gcnt  # (Gb, 2)
            g_mean = g_stats[:, 0:1]
            g_var = jnp.maximum(g_stats[:, 1:2] - g_mean * g_mean, 0.0)   # clamp -> no NaN
            g_rstd = lax.rsqrt(g_var + EPS)
            g_mr = jnp.where(col_g == 0, g_mean, g_rstd)                  # (Gb, 2): [mean, rstd]
            mr_c = jnp.dot(At, g_mr, preferred_element_type=jnp.float32)  # (Cb, 2)
            mean_c = mr_c[:, 0:1]
            rstd_c = mr_c[:, 1:2]

            # --- fused affine (incl. folded conv bias) + LeakyReLU(0.2) ---
            scale = rstd_c * gamma                               # (Cb, 1)
            shift = (bb - mean_c) * scale + beta
            yn = y * scale + shift
            out_ref[bi] = jnp.where(yn > 0, yn, NEG_SLOPE * yn).astype(out_ref.dtype)

    return kernel


def dcgan_conv_forward(x, w, b, gamma, beta, stride):
    """x: (B, nin, H, W) NCHW f32.  w: (nout, nin, 3, 3).  Returns (B, nout, Ho, Wo) f32."""
    B, cin, H, W = x.shape
    nout = w.shape[0]
    s = int(stride)
    assert nout % NUM_GROUPS == 0
    group_size = nout // NUM_GROUPS

    Hp, Wp = H + 2, W + 2
    Ho = (Hp - KH) // s + 1
    Wo = (Wp - KW) // s + 1
    Hph = -(-Hp // s)                      # ceil(Hp / s)
    Wph = -(-Wp // s)
    Lp = Hph * Wph

    L_OUT = _round_up(Ho * Wph, 128)       # lane-dense padded output width
    off_max = ((KH - 1) // s) * Wph + (KW - 1) // s
    L_IN = _round_up(max(L_OUT + off_max, Lp), 128)

    # channel split only when batch alone can't feed 2 TensorCores (v7x, B == 1)
    n_split = 2 if (B == 1 and NUM_GROUPS % 2 == 0 and nout % 16 == 0) else 1
    Cb = nout // n_split
    Gb = NUM_GROUPS // n_split

    # batch blocking: fewer, fatter grid steps; keep >= 2 batch steps when B >= 2 so the
    # batch ("parallel") axis can still be sharded across both v7x TensorCores.
    per_img_bytes = s * s * cin * L_IN * 2 + Cb * L_OUT * 4
    min_steps = 2 if B >= 2 else 1
    Bb = 1
    for d in range(1, B + 1):
        if B % d == 0 and B // d >= min_steps and d * per_img_bytes <= 6 * 2**20:
            Bb = d

    # --- glue: bf16 cast FIRST, then pad + polyphase decompose + flatten (1x traffic) ---
    xbf = x.astype(jnp.bfloat16)
    xp = jnp.pad(xbf, ((0, 0), (0, 0), (1, 1), (1, 1)))
    phase_list = []
    for p in range(s):
        for q in range(s):
            ph = xp[:, :, p::s, q::s]
            ph = jnp.pad(ph, ((0, 0), (0, 0),
                              (0, Hph - ph.shape[2]), (0, Wph - ph.shape[3])))
            phase_list.append(ph.reshape(B, 1, cin, Lp))
    x_stack = phase_list[0] if len(phase_list) == 1 else jnp.concatenate(phase_list, axis=1)
    x_stack = jnp.pad(x_stack, ((0, 0), (0, 0), (0, 0), (0, L_IN - Lp)))  # (B, s*s, cin, L_IN)

    # tap-concatenated weights: W_cat[o, t*cin + c] = w[o, c, kh, kw], t = kh*3 + kw
    w_cat = jnp.transpose(w, (0, 2, 3, 1)).reshape(nout, KH * KW * cin).astype(jnp.bfloat16)
    b2 = b.reshape(nout, 1).astype(jnp.float32)
    g2 = gamma.reshape(nout, 1).astype(jnp.float32)
    be2 = beta.reshape(nout, 1).astype(jnp.float32)

    # validity mask over the padded flat output layout
    qi = np.arange(L_OUT)
    mask_np = ((qi // Wph < Ho) & (qi % Wph < Wo)).astype(np.float32).reshape(1, L_OUT)
    mask = jnp.asarray(mask_np)
    n_valid = Ho * Wo

    # per-split group aggregate / broadcast one-hots (identical for both splits)
    grp_ids = np.arange(Cb) // group_size
    A_np = (grp_ids[None, :] == np.arange(Gb)[:, None]).astype(np.float32)   # (Gb, Cb)
    A_j = jnp.asarray(A_np)
    At_j = jnp.asarray(A_np.T)

    kernel = _make_kernel(s, cin, Wph, L_OUT, n_valid, group_size, Bb)

    # VMEM budget: double-buffered blocks + tap-slab scratch + headroom, capped at
    # <= half the physical VMEM (48 MiB on v5e/v6e's 128 MiB, 32 MiB on v7x's 64 MiB).
    x_blk = Bb * s * s * cin * L_IN * 2
    w_blk = Cb * KH * KW * cin * 2
    out_blk = Bb * Cb * L_OUT * 4
    small_blk = (3 * Cb + 2 * Gb * Cb + L_OUT) * 4
    scratch_blk = _round_up(KH * KW * cin, 16) * L_OUT * 2
    try:
        phys_vmem = int(pltpu.get_tpu_info().vmem_capacity_bytes)
    except Exception:  # pragma: no cover - conservative fallback
        phys_vmem = 64 * 2**20
    vmem_cap = min(48 * 2**20, phys_vmem // 2)
    vmem_need = 3 * (x_blk + w_blk + out_blk + small_blk) + scratch_blk + (2 << 20)
    vmem_limit = int(min(max(vmem_need, 16 * 2**20), vmem_cap))

    cost = pl.CostEstimate(
        flops=2 * B * nout * (KH * KW * cin) * L_OUT,
        transcendentals=B * NUM_GROUPS,
        bytes_accessed=int(x_stack.size * 2 + w_cat.size * 2 + B * nout * L_OUT * 4),
    )

    out_flat = pl.pallas_call(
        kernel,
        out_shape=jax.ShapeDtypeStruct((B, nout, L_OUT), jnp.float32),
        grid_spec=pltpu.PrefetchScalarGridSpec(
            num_scalar_prefetch=0,
            grid=(B // Bb, n_split),
            in_specs=[
                pl.BlockSpec((Bb, s * s, cin, L_IN), lambda bi, si: (bi, 0, 0, 0)),
                pl.BlockSpec((Cb, KH * KW * cin), lambda bi, si: (si, 0)),
                pl.BlockSpec((Cb, 1), lambda bi, si: (si, 0)),
                pl.BlockSpec((Cb, 1), lambda bi, si: (si, 0)),
                pl.BlockSpec((Cb, 1), lambda bi, si: (si, 0)),
                pl.BlockSpec((Gb, Cb), lambda bi, si: (0, 0)),
                pl.BlockSpec((Cb, Gb), lambda bi, si: (0, 0)),
                pl.BlockSpec((1, L_OUT), lambda bi, si: (0, 0)),
            ],
            out_specs=pl.BlockSpec((Bb, Cb, L_OUT), lambda bi, si: (bi, si, 0)),
            scratch_shapes=[pltpu.VMEM((KH * KW * cin, L_OUT), jnp.bfloat16)],
        ),
        compiler_params=pltpu.CompilerParams(
            dimension_semantics=("parallel", "parallel"),
            vmem_limit_bytes=vmem_limit,
        ),
        cost_estimate=cost,
    )(x_stack, w_cat, b2, g2, be2, A_j, At_j, mask)

    # un-pad the flat layout back to NCHW
    # (for PhyDNet-scale H,W the L_OUT axis would additionally be tiled with a
    #  two-pass GroupNorm; at these sizes the single-pass kernel is the right regime)
    out = out_flat[:, :, :Ho * Wph].reshape(B, nout, Ho, Wph)[:, :, :, :Wo]
    return out


def _reference(x, w, b, gamma, beta, stride):
    """Pure-JAX reference matching PyTorch semantics."""
    y = lax.conv_general_dilated(
        x, w, window_strides=(stride, stride), padding=((1, 1), (1, 1)),
        dimension_numbers=("NCHW", "OIHW", "NCHW"))
    y = y + b[None, :, None, None]
    B, C, H, W = y.shape
    yg = y.reshape(B, NUM_GROUPS, C // NUM_GROUPS, H, W)
    mean = yg.mean(axis=(2, 3, 4), keepdims=True)
    var = yg.var(axis=(2, 3, 4), keepdims=True)
    yn = ((yg - mean) / jnp.sqrt(var + EPS)).reshape(B, C, H, W)
    yn = yn * gamma[None, :, None, None] + beta[None, :, None, None]
    return jnp.where(yn > 0, yn, NEG_SLOPE * yn)


if __name__ == "__main__":
    key = jax.random.PRNGKey(0)
    B, nin, nout, H, W = 2, 4, 32, 16, 16     # nout divisible by 16 for GroupNorm(16, .)

    k1, k2, k3, k4, k5 = jax.random.split(key, 5)
    x = jax.random.normal(k1, (B, nin, H, W), dtype=jnp.float32)
    w = jax.random.normal(k2, (nout, nin, 3, 3), dtype=jnp.float32) * 0.1
    b = jax.random.normal(k3, (nout,), dtype=jnp.float32) * 0.1
    gamma = 1.0 + 0.1 * jax.random.normal(k4, (nout,), dtype=jnp.float32)
    beta = 0.1 * jax.random.normal(k5, (nout,), dtype=jnp.float32)

    for stride in (1, 2):
        out = jax.block_until_ready(dcgan_conv_forward(x, w, b, gamma, beta, stride))
        ref = jax.block_until_ready(_reference(x, w, b, gamma, beta, stride))
        assert out.shape == ref.shape, (out.shape, ref.shape)
        np.testing.assert_allclose(np.asarray(out), np.asarray(ref), rtol=5e-2, atol=5e-2)

    print("KERNEL_OK")
</pallas_src>

<mosaic_0001>
module attributes {stable_mosaic.version = 11 : i64} {
  func.func @kernel(%arg0: i32, %arg1: i32, %arg2: memref<1x1x4x512xbf16, #tpu.memory_space<vmem>>, %arg3: memref<32x36xbf16, #tpu.memory_space<vmem>>, %arg4: memref<32x1xf32, #tpu.memory_space<vmem>>, %arg5: memref<32x1xf32, #tpu.memory_space<vmem>>, %arg6: memref<32x1xf32, #tpu.memory_space<vmem>>, %arg7: memref<16x32xf32, #tpu.memory_space<vmem>>, %arg8: memref<32x16xf32, #tpu.memory_space<vmem>>, %arg9: memref<1x384xf32, #tpu.memory_space<vmem>>, %arg10: memref<1x32x384xf32, #tpu.memory_space<vmem>>, %arg11: memref<36x384xbf16, #tpu.memory_space<vmem>>) attributes {dimension_semantics = [#tpu.dimension_semantics<parallel>, #tpu.dimension_semantics<parallel>], iteration_bounds = array<i64: 2, 1>, scalar_prefetch = 0 : i64, scratch_operands = 1 : i64, tpu.core_type = #tpu.core_type<tc>, window_params = [{transform_indices = @transform_0, window_bounds = array<i64: 1, 1, 4, 512>}, {transform_indices = @transform_1, window_bounds = array<i64: 32, 36>}, {transform_indices = @transform_2, window_bounds = array<i64: 32, 1>}, {transform_indices = @transform_3, window_bounds = array<i64: 32, 1>}, {transform_indices = @transform_4, window_bounds = array<i64: 32, 1>}, {pipeline_mode = #tpu.pipeline_mode<synchronous>, transform_indices = @transform_5, window_bounds = array<i64: 16, 32>}, {pipeline_mode = #tpu.pipeline_mode<synchronous>, transform_indices = @transform_6, window_bounds = array<i64: 32, 16>}, {pipeline_mode = #tpu.pipeline_mode<synchronous>, transform_indices = @transform_7, window_bounds = array<i64: 1, 384>}, {transform_indices = @transform_8, window_bounds = array<i64: 1, 32, 384>}]} {
    %c0 = arith.constant 0 : index
    %c0_0 = arith.constant 0 : index
    %0 = vector.load %arg3[%c0, %c0_0] : memref<32x36xbf16, #tpu.memory_space<vmem>>, vector<32x36xbf16>
    %c0_1 = arith.constant 0 : index
    %c0_2 = arith.constant 0 : index
    %1 = vector.load %arg9[%c0_1, %c0_2] : memref<1x384xf32, #tpu.memory_space<vmem>>, vector<1x384xf32>
    %c0_3 = arith.constant 0 : index
    %c0_4 = arith.constant 0 : index
    %2 = vector.load %arg4[%c0_3, %c0_4] : memref<32x1xf32, #tpu.memory_space<vmem>>, vector<32x1xf32>
    %c0_5 = arith.constant 0 : index
    %c0_6 = arith.constant 0 : index
    %3 = vector.load %arg5[%c0_5, %c0_6] : memref<32x1xf32, #tpu.memory_space<vmem>>, vector<32x1xf32>
    %c0_7 = arith.constant 0 : index
    %c0_8 = arith.constant 0 : index
    %4 = vector.load %arg6[%c0_7, %c0_8] : memref<32x1xf32, #tpu.memory_space<vmem>>, vector<32x1xf32>
    %c0_9 = arith.constant 0 : index
    %c0_10 = arith.constant 0 : index
    %5 = vector.load %arg7[%c0_9, %c0_10] : memref<16x32xf32, #tpu.memory_space<vmem>>, vector<16x32xf32>
    %c0_11 = arith.constant 0 : index
    %c0_12 = arith.constant 0 : index
    %6 = vector.load %arg8[%c0_11, %c0_12] : memref<32x16xf32, #tpu.memory_space<vmem>>, vector<32x16xf32>
    %7 = tpu.iota {dimensions = array<i32: 1>} : vector<32x2xi32>
    %8 = tpu.iota {dimensions = array<i32: 1>} : vector<16x2xi32>
    %c0_13 = arith.constant 0 : index
    %c0_14 = arith.constant 0 : index
    %c0_15 = arith.constant 0 : index
    %c0_16 = arith.constant 0 : index
    %9 = vector.load %arg2[%c0_13, %c0_14, %c0_15, %c0_16] : memref<1x1x4x512xbf16, #tpu.memory_space<vmem>>, vector<1x1x4x384xbf16>
    %10 = vector.shape_cast %9 : vector<1x1x4x384xbf16> to vector<4x384xbf16>
    %c0_17 = arith.constant 0 : index
    %c0_18 = arith.constant 0 : index
    %11 = vector.load %arg11[%c0_17, %c0_18] : memref<36x384xbf16, #tpu.memory_space<vmem>>, vector<4x384xbf16>
    tpu.vector_store %arg11[%c0_17, %c0_18], %10 {strides = array<i32>} : memref<36x384xbf16, #tpu.memory_space<vmem>>, vector<4x384xbf16>,
    %c0_19 = arith.constant 0 : index
    %c0_20 = arith.constant 0 : index
    %c0_21 = arith.constant 0 : index
    %c1 = arith.constant 1 : index
    %12 = vector.load %arg2[%c0_19, %c0_20, %c0_21, %c1] : memref<1x1x4x512xbf16, #tpu.memory_space<vmem>>, vector<1x1x4x384xbf16>
    %13 = vector.shape_cast %12 : vector<1x1x4x384xbf16> to vector<4x384xbf16>
    %c4 = arith.constant 4 : index
    %c0_22 = arith.constant 0 : index
    %14 = vector.load %arg11[%c4, %c0_22] : memref<36x384xbf16, #tpu.memory_space<vmem>>, vector<4x384xbf16>
    tpu.vector_store %arg11[%c4, %c0_22], %13 {strides = array<i32>} : memref<36x384xbf16, #tpu.memory_space<vmem>>, vector<4x384xbf16>,
    %c0_23 = arith.constant 0 : index
    %c0_24 = arith.constant 0 : index
    %c0_25 = arith.constant 0 : index
    %c2 = arith.constant 2 : index
    %15 = vector.load %arg2[%c0_23, %c0_24, %c0_25, %c2] : memref<1x1x4x512xbf16, #tpu.memory_space<vmem>>, vector<1x1x4x384xbf16>
    %16 = vector.shape_cast %15 : vector<1x1x4x384xbf16> to vector<4x384xbf16>
    %c8 = arith.constant 8 : index
    %c0_26 = arith.constant 0 : index
    %17 = vector.load %arg11[%c8, %c0_26] : memref<36x384xbf16, #tpu.memory_space<vmem>>, vector<4x384xbf16>
    tpu.vector_store %arg11[%c8, %c0_26], %16 {strides = array<i32>} : memref<36x384xbf16, #tpu.memory_space<vmem>>, vector<4x384xbf16>,
    %c0_27 = arith.constant 0 : index
    %c0_28 = arith.constant 0 : index
    %c0_29 = arith.constant 0 : index
    %c18 = arith.constant 18 : index
    %18 = vector.load %arg2[%c0_27, %c0_28, %c0_29, %c18] : memref<1x1x4x512xbf16, #tpu.memory_space<vmem>>, vector<1x1x4x384xbf16>
    %19 = vector.shape_cast %18 : vector<1x1x4x384xbf16> to vector<4x384xbf16>
    %c12 = arith.constant 12 : index
    %c0_30 = arith.constant 0 : index
    %20 = vector.load %arg11[%c12, %c0_30] : memref<36x384xbf16, #tpu.memory_space<vmem>>, vector<4x384xbf16>
    tpu.vector_store %arg11[%c12, %c0_30], %19 {strides = array<i32>} : memref<36x384xbf16, #tpu.memory_space<vmem>>, vector<4x384xbf16>,
    %c0_31 = arith.constant 0 : index
    %c0_32 = arith.constant 0 : index
    %c0_33 = arith.constant 0 : index
    %c19 = arith.constant 19 : index
    %21 = vector.load %arg2[%c0_31, %c0_32, %c0_33, %c19] : memref<1x1x4x512xbf16, #tpu.memory_space<vmem>>, vector<1x1x4x384xbf16>
    %22 = vector.shape_cast %21 : vector<1x1x4x384xbf16> to vector<4x384xbf16>
    %c16 = arith.constant 16 : index
    %c0_34 = arith.constant 0 : index
    %23 = vector.load %arg11[%c16, %c0_34] : memref<36x384xbf16, #tpu.memory_space<vmem>>, vector<4x384xbf16>
    tpu.vector_store %arg11[%c16, %c0_34], %22 {strides = array<i32>} : memref<36x384xbf16, #tpu.memory_space<vmem>>, vector<4x384xbf16>,
    %c0_35 = arith.constant 0 : index
    %c0_36 = arith.constant 0 : index
    %c0_37 = arith.constant 0 : index
    %c20 = arith.constant 20 : index
    %24 = vector.load %arg2[%c0_35, %c0_36, %c0_37, %c20] : memref<1x1x4x512xbf16, #tpu.memory_space<vmem>>, vector<1x1x4x384xbf16>
    %25 = vector.shape_cast %24 : vector<1x1x4x384xbf16> to vector<4x384xbf16>
    %c20_38 = arith.constant 20 : index
    %c0_39 = arith.constant 0 : index
    %26 = vector.load %arg11[%c20_38, %c0_39] : memref<36x384xbf16, #tpu.memory_space<vmem>>, vector<4x384xbf16>
    tpu.vector_store %arg11[%c20_38, %c0_39], %25 {strides = array<i32>} : memref<36x384xbf16, #tpu.memory_space<vmem>>, vector<4x384xbf16>,
    %c0_40 = arith.constant 0 : index
    %c0_41 = arith.constant 0 : index
    %c0_42 = arith.constant 0 : index
    %c36 = arith.constant 36 : index
    %27 = vector.load %arg2[%c0_40, %c0_41, %c0_42, %c36] : memref<1x1x4x512xbf16, #tpu.memory_space<vmem>>, vector<1x1x4x384xbf16>
    %28 = vector.shape_cast %27 : vector<1x1x4x384xbf16> to vector<4x384xbf16>
    %c24 = arith.constant 24 : index
    %c0_43 = arith.constant 0 : index
    %29 = vector.load %arg11[%c24, %c0_43] : memref<36x384xbf16, #tpu.memory_space<vmem>>, vector<4x384xbf16>
    tpu.vector_store %arg11[%c24, %c0_43], %28 {strides = array<i32>} : memref<36x384xbf16, #tpu.memory_space<vmem>>, vector<4x384xbf16>,
    %c0_44 = arith.constant 0 : index
    %c0_45 = arith.constant 0 : index
    %c0_46 = arith.constant 0 : index
    %c37 = arith.constant 37 : index
    %30 = vector.load %arg2[%c0_44, %c0_45, %c0_46, %c37] : memref<1x1x4x512xbf16, #tpu.memory_space<vmem>>, vector<1x1x4x384xbf16>
    %31 = vector.shape_cast %30 : vector<1x1x4x384xbf16> to vector<4x384xbf16>
    %c28 = arith.constant 28 : index
    %c0_47 = arith.constant 0 : index
    %32 = vector.load %arg11[%c28, %c0_47] : memref<36x384xbf16, #tpu.memory_space<vmem>>, vector<4x384xbf16>
    tpu.vector_store %arg11[%c28, %c0_47], %31 {strides = array<i32>} : memref<36x384xbf16, #tpu.memory_space<vmem>>, vector<4x384xbf16>,
    %c0_48 = arith.constant 0 : index
    %c0_49 = arith.constant 0 : index
    %c0_50 = arith.constant 0 : index
    %c38 = arith.constant 38 : index
    %33 = vector.load %arg2[%c0_48, %c0_49, %c0_50, %c38] : memref<1x1x4x512xbf16, #tpu.memory_space<vmem>>, vector<1x1x4x384xbf16>
    %34 = vector.shape_cast %33 : vector<1x1x4x384xbf16> to vector<4x384xbf16>
    %c32 = arith.constant 32 : index
    %c0_51 = arith.constant 0 : index
    %35 = vector.load %arg11[%c32, %c0_51] : memref<36x384xbf16, #tpu.memory_space<vmem>>, vector<4x384xbf16>
    tpu.vector_store %arg11[%c32, %c0_51], %34 {strides = array<i32>} : memref<36x384xbf16, #tpu.memory_space<vmem>>, vector<4x384xbf16>,
    %c0_52 = arith.constant 0 : index
    %c0_53 = arith.constant 0 : index
    %36 = vector.load %arg11[%c0_52, %c0_53] : memref<36x384xbf16, #tpu.memory_space<vmem>>, vector<36x384xbf16>
    %cst = arith.constant dense<0.000000e+00> : vector<32x384xf32>
    %37 = tpu.matmul %0, %36, %cst {dimension_numbers = #tpu.dot_dimension_numbers<[1], [0], [0], [1], [0, 0, 1, 1], [], []>} : vector<32x36xbf16>, vector<36x384xbf16>, vector<32x384xf32> -> vector<32x384xf32>
    %38 = vector.broadcast %1 : vector<1x384xf32> to vector<32x384xf32>
    %39 = arith.mulf %37, %38 : vector<32x384xf32>
    %cst_54 = arith.constant dense<0.000000e+00> : vector<32xf32>
    %40 = vector.multi_reduction <add>, %39, %cst_54 [1] : vector<32x384xf32> to vector<32xf32>
    %41 = vector.shape_cast %40 : vector<32xf32> to vector<32x1xf32>
    %42 = arith.mulf %39, %37 : vector<32x384xf32>
    %cst_55 = arith.constant dense<0.000000e+00> : vector<32xf32>
    %43 = vector.multi_reduction <add>, %42, %cst_55 [1] : vector<32x384xf32> to vector<32xf32>
    %44 = vector.shape_cast %43 : vector<32xf32> to vector<32x1xf32>
    %cst_56 = arith.constant 2.560000e+02 : f32
    %45 = vector.broadcast %cst_56 : f32 to vector<32x1xf32>
    %46 = arith.mulf %2, %45 : vector<32x1xf32>
    %47 = arith.addf %41, %46 : vector<32x1xf32>
    %cst_57 = arith.constant 2.000000e+00 : f32
    %48 = vector.broadcast %cst_57 : f32 to vector<32x1xf32>
    %49 = arith.mulf %48, %2 : vector<32x1xf32>
    %50 = arith.mulf %49, %41 : vector<32x1xf32>
    %51 = arith.addf %44, %50 : vector<32x1xf32>
    %52 = arith.mulf %2, %2 : vector<32x1xf32>
    %cst_58 = arith.constant 2.560000e+02 : f32
    %53 = vector.broadcast %cst_58 : f32 to vector<32x1xf32>
    %54 = arith.mulf %52, %53 : vector<32x1xf32>
    %55 = arith.addf %51, %54 : vector<32x1xf32>
    %c0_i32 = arith.constant 0 : i32
    %56 = vector.broadcast %c0_i32 : i32 to vector<32x2xi32>
    %57 = arith.cmpi eq, %7, %56 : vector<32x2xi32>
    %58 = vector.shape_cast %47 : vector<32x1xf32> to vector<32x1xf32>
    %59 = vector.broadcast %58 : vector<32x1xf32> to vector<32x2xf32>
    %60 = vector.shape_cast %55 : vector<32x1xf32> to vector<32x1xf32>
    %61 = vector.broadcast %60 : vector<32x1xf32> to vector<32x2xf32>
    %62 = arith.select %57, %59, %61 : vector<32x2xi1>, vector<32x2xf32>
    %cst_59 = arith.constant dense<0.000000e+00> : vector<16x2xf32>
    %63 = tpu.matmul %5, %62, %cst_59 {dimension_numbers = #tpu.dot_dimension_numbers<[1], [0], [0], [1], [0, 0, 1, 1], [], []>} : vector<16x32xf32>, vector<32x2xf32>, vector<16x2xf32> -> vector<16x2xf32>
    %cst_60 = arith.constant 0.001953125 : f32
    %64 = vector.broadcast %cst_60 : f32 to vector<16x2xf32>
    %65 = arith.mulf %63, %64 : vector<16x2xf32>
    %66 = vector.extract_strided_slice %65 {offsets = [0, 0], sizes = [16, 1], strides = [1, 1]} : vector<16x2xf32> to vector<16x1xf32>
    %67 = vector.extract_strided_slice %65 {offsets = [0, 1], sizes = [16, 1], strides = [1, 1]} : vector<16x2xf32> to vector<16x1xf32>
    %68 = arith.mulf %66, %66 : vector<16x1xf32>
    %69 = arith.subf %67, %68 : vector<16x1xf32>
    %cst_61 = arith.constant 0.000000e+00 : f32
    %70 = vector.broadcast %cst_61 : f32 to vector<16x1xf32>
    %71 = arith.maximumf %69, %70 : vector<16x1xf32>
    %cst_62 = arith.constant 9.99999974E-6 : f32
    %72 = vector.broadcast %cst_62 : f32 to vector<16x1xf32>
    %73 = arith.addf %71, %72 : vector<16x1xf32>
    %74 = math.rsqrt %73 : vector<16x1xf32>
    %c0_i32_63 = arith.constant 0 : i32
    %75 = vector.broadcast %c0_i32_63 : i32 to vector<16x2xi32>
    %76 = arith.cmpi eq, %8, %75 : vector<16x2xi32>
    %77 = vector.shape_cast %66 : vector<16x1xf32> to vector<16x1xf32>
    %78 = vector.broadcast %77 : vector<16x1xf32> to vector<16x2xf32>
    %79 = vector.shape_cast %74 : vector<16x1xf32> to vector<16x1xf32>
    %80 = vector.broadcast %79 : vector<16x1xf32> to vector<16x2xf32>
    %81 = arith.select %76, %78, %80 : vector<16x2xi1>, vector<16x2xf32>
    %cst_64 = arith.constant dense<0.000000e+00> : vector<32x2xf32>
    %82 = tpu.matmul %6, %81, %cst_64 {dimension_numbers = #tpu.dot_dimension_numbers<[1], [0], [0], [1], [0, 0, 1, 1], [], []>} : vector<32x16xf32>, vector<16x2xf32>, vector<32x2xf32> -> vector<32x2xf32>
    %83 = vector.extract_strided_slice %82 {offsets = [0, 0], sizes = [32, 1], strides = [1, 1]} : vector<32x2xf32> to vector<32x1xf32>
    %84 = vector.extract_strided_slice %82 {offsets = [0, 1], sizes = [32, 1], strides = [1, 1]} : vector<32x2xf32> to vector<32x1xf32>
    %85 = arith.mulf %84, %3 : vector<32x1xf32>
    %86 = arith.subf %2, %83 : vector<32x1xf32>
    %87 = arith.mulf %86, %85 : vector<32x1xf32>
    %88 = arith.addf %87, %4 : vector<32x1xf32>
    %89 = vector.broadcast %85 : vector<32x1xf32> to vector<32x384xf32>
    %90 = arith.mulf %37, %89 : vector<32x384xf32>
    %91 = vector.broadcast %88 : vector<32x1xf32> to vector<32x384xf32>
    %92 = arith.addf %90, %91 : vector<32x384xf32>
    %cst_65 = arith.constant 0.000000e+00 : f32
    %93 = vector.broadcast %cst_65 : f32 to vector<32x384xf32>
    %94 = arith.cmpf ogt, %92, %93 : vector<32x384xf32>
    %cst_66 = arith.constant 2.000000e-01 : f32
    %95 = vector.broadcast %cst_66 : f32 to vector<32x384xf32>
    %96 = arith.mulf %95, %92 : vector<32x384xf32>
    %97 = arith.select %94, %92, %96 : vector<32x384xi1>, vector<32x384xf32>
    %c0_67 = arith.constant 0 : index
    %c0_68 = arith.constant 0 : index
    %c0_69 = arith.constant 0 : index
    %98 = vector.load %arg10[%c0_67, %c0_68, %c0_69] : memref<1x32x384xf32, #tpu.memory_space<vmem>>, vector<1x32x384xf32>
    %99 = vector.shape_cast %98 : vector<1x32x384xf32> to vector<32x384xf32>
    %100 = vector.shape_cast %97 : vector<32x384xf32> to vector<1x32x384xf32>
    tpu.vector_store %arg10[%c0_67, %c0_68, %c0_69], %100 {strides = array<i32>} : memref<1x32x384xf32, #tpu.memory_space<vmem>>, vector<1x32x384xf32>,
    return
  }
  func.func @transform_0(%arg0: i32, %arg1: i32) -> (i32, i32, i32, i32) {
    %c0_i32 = arith.constant 0 : i32
    %c0_i32_0 = arith.constant 0 : i32
    %c0_i32_1 = arith.constant 0 : i32
    %c0_i32_2 = arith.constant 0 : i32
    return %arg0, %c0_i32, %c0_i32_0, %c0_i32_1 : i32, i32, i32, i32
  }
  func.func @transform_1(%arg0: i32, %arg1: i32) -> (i32, i32) {
    %c0_i32 = arith.constant 0 : i32
    %c0_i32_0 = arith.constant 0 : i32
    return %arg1, %c0_i32 : i32, i32
  }
  func.func @transform_2(%arg0: i32, %arg1: i32) -> (i32, i32) {
    %c0_i32 = arith.constant 0 : i32
    %c0_i32_0 = arith.constant 0 : i32
    return %arg1, %c0_i32 : i32, i32
  }
  func.func @transform_3(%arg0: i32, %arg1: i32) -> (i32, i32) {
    %c0_i32 = arith.constant 0 : i32
    %c0_i32_0 = arith.constant 0 : i32
    return %arg1, %c0_i32 : i32, i32
  }
  func.func @transform_4(%arg0: i32, %arg1: i32) -> (i32, i32) {
    %c0_i32 = arith.constant 0 : i32
    %c0_i32_0 = arith.constant 0 : i32
    return %arg1, %c0_i32 : i32, i32
  }
  func.func @transform_5(%arg0: i32, %arg1: i32) -> (i32, i32) {
    %c0_i32 = arith.constant 0 : i32
    %c0_i32_0 = arith.constant 0 : i32
    %c0_i32_1 = arith.constant 0 : i32
    return %c0_i32, %c0_i32_0 : i32, i32
  }
  func.func @transform_6(%arg0: i32, %arg1: i32) -> (i32, i32) {
    %c0_i32 = arith.constant 0 : i32
    %c0_i32_0 = arith.constant 0 : i32
    %c0_i32_1 = arith.constant 0 : i32
    return %c0_i32, %c0_i32_0 : i32, i32
  }
  func.func @transform_7(%arg0: i32, %arg1: i32) -> (i32, i32) {
    %c0_i32 = arith.constant 0 : i32
    %c0_i32_0 = arith.constant 0 : i32
    %c0_i32_1 = arith.constant 0 : i32
    return %c0_i32, %c0_i32_0 : i32, i32
  }
  func.func @transform_8(%arg0: i32, %arg1: i32) -> (i32, i32, i32) {
    %c0_i32 = arith.constant 0 : i32
    %c0_i32_0 = arith.constant 0 : i32
    return %arg0, %arg1, %c0_i32 : i32, i32, i32
  }
}

</mosaic_0001>

<llo_original>
// kernel: tpu_custom_call.1
$region0: #{tpu_custom_call.1}
  #allocation0 [shape = 'u32[]', space=smem, size = 0x4, offset = 0x4, fixed_abs, tag = 'smem constant byte address 0x4 - core index']
  #allocation1 [shape = 'u32[144,128]{1,0:T(1,128)}', space=vmem, size = 0x12000, scoped, tag = 'internal scratch']
  #allocation2 [shape = 'bf16[36,384]{1,0:T(8,128)(2,1)}', space=vmem, size = 0x7800, scoped, tag = 'scratch operand']
  %s0 = inlined_call_operand.vmem [shape: bf16[2,1,4,512], index: 0, kind: input, shape index: {}]
  %s1 = inlined_call_operand.vmem [shape: bf16[32,36], index: 1, kind: input, shape index: {}]
  %s2 = inlined_call_operand.vmem [shape: f32[32,1], index: 2, kind: input, shape index: {}]
  %s3 = inlined_call_operand.vmem [shape: f32[32,1], index: 3, kind: input, shape index: {}]
  %s4 = inlined_call_operand.vmem [shape: f32[32,1], index: 4, kind: input, shape index: {}]
  %s5 = inlined_call_operand.vmem [shape: f32[16,32], index: 5, kind: input, shape index: {}]
  %s6 = inlined_call_operand.vmem [shape: f32[32,16], index: 6, kind: input, shape index: {}]
  %s7 = inlined_call_operand.vmem [shape: f32[1,384], index: 7, kind: input, shape index: {}]
  %s8 = inlined_call_operand.hbm [shape: f32[2,32,384], index: 8, kind: output, shape index: {}]
  %s9 = sld [smem:[#allocation0]]
  $region65: #{tpu_custom_call.1} parent=0
    _
  %s11 = ssub.s32 1, %s9
  %s12 = scalar_select 0, %s11, %s9
  $region1: #{tpu_custom_call.1} parent=0
    #allocation3 [shape = 'u8[98304]{0}', space=vmem, size = 0x18000, scoped, tag = 'output window, operand 0']
    #allocation4 [shape = 's32[2]{0}', space=sflag, size = 0x8, scoped, tag = 'scoped memory for tpu_custom_call.1']
    %13 = vsyncpa [#allocation4], 0
    %s14 = scalar_lea.sflag [#allocation4], 1
    %15 = vsyncpa %s14, 0
    loop: start=0, step=1, limit=4
    $region2: #{tpu_custom_call.1} parent=1 // loop_pre_header
      _
    $region3: #{tpu_custom_call.1} parent=1 // loop_header
      %s17 = sphi 0, %s21
      %p18 = scmp.ge.s32.totalorder %s17, 4
      %s24 = sphi 0, %s36
      %s25 = sphi 0, %s32
      %s26 = sphi 0, %s24
      %s27 = sphi 0, %s25
      %s28 = sphi 0, %s26
      %s29 = sphi 0, %s27
      %s39 = sphi 0, %s41
      %s42 = sphi 0, %s39
      %s43 = sphi 0, %s42
      %s59 = sphi 0, %s43
      %s65 = sphi 0, %s67
      %s68 = sphi 0, %s65
      %s69 = sphi 0, %s68
      %s85 = sphi 0, %s69
      %s91 = sphi 0, %s93
      %s94 = sphi 0, %s91
      %s95 = sphi 0, %s94
      %s111 = sphi 0, %s95
      %s117 = sphi 0, %s119
      %s120 = sphi 0, %s117
      %s121 = sphi 0, %s120
      %s137 = sphi 0, %s121
      %s143 = sphi 0, %s145
      %s146 = sphi 0, %s143
      %s147 = sphi 0, %s146
      %s163 = sphi 0, %s147
      %s167 = sphi 0, %s167
      %s169 = sphi 0, %s167
      %s170 = sphi 0, %s169
      %s184 = sphi 0, %s170
      %s188 = sphi 0, %s188
      %s190 = sphi 0, %s188
      %s191 = sphi 0, %s190
      %s205 = sphi 0, %s191
      %s209 = sphi 0, %s209
      %s211 = sphi 0, %s209
      %s212 = sphi 0, %s211
      %s226 = sphi 0, %s212
      %s234 = sphi 0, %s236
      %s237 = sphi 0, %s234
      %s238 = sphi 0, %s237
      %s254 = sphi 0, %s238
    $region4: #{tpu_custom_call.1} parent=1 // loop_header_branch
      %20 = sbr.rel (%p18) target = $region8
    $region5: #{tpu_custom_call.1} parent=1 // loop_body
      %s22 = ssub.s32 %s17, 1
      %s23 = ssub.s32 %s17, 2
      %s30 = sadd.s32 1, %s25
      %p31 = scmp.ge.s32.totalorder %s30, 1
      %s32 = scalar_select %p31, 0, %s30
      %s33 = sadd.s32 1, %s24
      %s34 = scalar_select %p31, %s33, %s24
      %p35 = scmp.ge.s32.totalorder %s34, 2
      %s36 = scalar_select %p35, 0, %s34
      %s37 = ssub.s32 %s24, %s36
      %p38 = scmp.eq.s32.totalorder %s37, 0
      %s40 = sadd.s32 %s39, 1
      %s41 = scalar_select %p38, %s39, %s40
      %p44 = pneg %p38
      %p45 = scmp.eq.s32.totalorder %s17, 1
      %p46 = por %p44, %p45
      %p47 = scmp.ne.s32.totalorder %s39, %s42
      %p48 = scmp.eq.s32.totalorder %s17, 0
      %p49 = por %p47, %p48
      %p50 = scmp.ne.s32.totalorder %s39, %s42
      %p51 = scmp.eq.s32.totalorder %s22, 1
      %p52 = por %p50, %p51
      %p53 = scmp.ne.s32.totalorder %s42, %s43
      %p54 = scmp.eq.s32.totalorder %s22, 0
      %p55 = por %p53, %p54
      %p56 = scmp.ne.s32.totalorder %s42, %s43
      %p57 = scmp.eq.s32.totalorder %s23, 1
      %p58 = por %p56, %p57
      %p60 = scmp.ne.s32.totalorder %s43, %s59
      %p61 = scmp.eq.s32.totalorder %s23, 0
      %p62 = por %p60, %p61
      %s63 = ssub.s32 %s25, %s32
      %p64 = scmp.eq.s32.totalorder %s63, 0
      %s66 = sadd.s32 %s65, 1
      %s67 = scalar_select %p64, %s65, %s66
      %p70 = pneg %p64
      %p71 = scmp.eq.s32.totalorder %s17, 1
      %p72 = por %p70, %p71
      %p73 = scmp.ne.s32.totalorder %s65, %s68
      %p74 = scmp.eq.s32.totalorder %s17, 0
      %p75 = por %p73, %p74
      %p76 = scmp.ne.s32.totalorder %s65, %s68
      %p77 = scmp.eq.s32.totalorder %s22, 1
      %p78 = por %p76, %p77
      %p79 = scmp.ne.s32.totalorder %s68, %s69
      %p80 = scmp.eq.s32.totalorder %s22, 0
      %p81 = por %p79, %p80
      %p82 = scmp.ne.s32.totalorder %s68, %s69
      %p83 = scmp.eq.s32.totalorder %s23, 1
      %p84 = por %p82, %p83
      %p86 = scmp.ne.s32.totalorder %s69, %s85
      %p87 = scmp.eq.s32.totalorder %s23, 0
      %p88 = por %p86, %p87
      %s89 = ssub.s32 %s25, %s32
      %p90 = scmp.eq.s32.totalorder %s89, 0
      %s92 = sadd.s32 %s91, 1
      %s93 = scalar_select %p90, %s91, %s92
      %p96 = pneg %p90
      %p97 = scmp.eq.s32.totalorder %s17, 1
      %p98 = por %p96, %p97
      %p99 = scmp.ne.s32.totalorder %s91, %s94
      %p100 = scmp.eq.s32.totalorder %s17, 0
      %p101 = por %p99, %p100
      %p102 = scmp.ne.s32.totalorder %s91, %s94
      %p103 = scmp.eq.s32.totalorder %s22, 1
      %p104 = por %p102, %p103
      %p105 = scmp.ne.s32.totalorder %s94, %s95
      %p106 = scmp.eq.s32.totalorder %s22, 0
      %p107 = por %p105, %p106
      %p108 = scmp.ne.s32.totalorder %s94, %s95
      %p109 = scmp.eq.s32.totalorder %s23, 1
      %p110 = por %p108, %p109
      %p112 = scmp.ne.s32.totalorder %s95, %s111
      %p113 = scmp.eq.s32.totalorder %s23, 0
      %p114 = por %p112, %p113
      %s115 = ssub.s32 %s25, %s32
      %p116 = scmp.eq.s32.totalorder %s115, 0
      %s118 = sadd.s32 %s117, 1
      %s119 = scalar_select %p116, %s117, %s118
      %p122 = pneg %p116
      %p123 = scmp.eq.s32.totalorder %s17, 1
      %p124 = por %p122, %p123
      %p125 = scmp.ne.s32.totalorder %s117, %s120
      %p126 = scmp.eq.s32.totalorder %s17, 0
      %p127 = por %p125, %p126
      %p128 = scmp.ne.s32.totalorder %s117, %s120
      %p129 = scmp.eq.s32.totalorder %s22, 1
      %p130 = por %p128, %p129
      %p131 = scmp.ne.s32.totalorder %s120, %s121
      %p132 = scmp.eq.s32.totalorder %s22, 0
      %p133 = por %p131, %p132
      %p134 = scmp.ne.s32.totalorder %s120, %s121
      %p135 = scmp.eq.s32.totalorder %s23, 1
      %p136 = por %p134, %p135
      %p138 = scmp.ne.s32.totalorder %s121, %s137
      %p139 = scmp.eq.s32.totalorder %s23, 0
      %p140 = por %p138, %p139
      %s141 = ssub.s32 %s25, %s32
      %p142 = scmp.eq.s32.totalorder %s141, 0
      %s144 = sadd.s32 %s143, 1
      %s145 = scalar_select %p142, %s143, %s144
      %p148 = pneg %p142
      %p149 = scmp.eq.s32.totalorder %s17, 1
      %p150 = por %p148, %p149
      %p151 = scmp.ne.s32.totalorder %s143, %s146
      %p152 = scmp.eq.s32.totalorder %s17, 0
      %p153 = por %p151, %p152
      %p154 = scmp.ne.s32.totalorder %s143, %s146
      %p155 = scmp.eq.s32.totalorder %s22, 1
      %p156 = por %p154, %p155
      %p157 = scmp.ne.s32.totalorder %s146, %s147
      %p158 = scmp.eq.s32.totalorder %s22, 0
      %p159 = por %p157, %p158
      %p160 = scmp.ne.s32.totalorder %s146, %s147
      %p161 = scmp.eq.s32.totalorder %s23, 1
      %p162 = por %p160, %p161
      %p164 = scmp.ne.s32.totalorder %s147, %s163
      %p165 = scmp.eq.s32.totalorder %s23, 0
      %p166 = por %p164, %p165
      %s168 = sadd.s32 %s167, 1
      %p171 = scmp.eq.s32.totalorder %s17, 1
      %p172 = scmp.ne.s32.totalorder %s167, %s169
      %p173 = scmp.eq.s32.totalorder %s17, 0
      %p174 = por %p172, %p173
      %p175 = scmp.ne.s32.totalorder %s167, %s169
      %p176 = scmp.eq.s32.totalorder %s22, 1
      %p177 = por %p175, %p176
      %p178 = scmp.ne.s32.totalorder %s169, %s170
      %p179 = scmp.eq.s32.totalorder %s22, 0
      %p180 = por %p178, %p179
      %p181 = scmp.ne.s32.totalorder %s169, %s170
      %p182 = scmp.eq.s32.totalorder %s23, 1
      %p183 = por %p181, %p182
      %p185 = scmp.ne.s32.totalorder %s170, %s184
      %p186 = scmp.eq.s32.totalorder %s23, 0
      %p187 = por %p185, %p186
      %s189 = sadd.s32 %s188, 1
      %p192 = scmp.eq.s32.totalorder %s17, 1
      %p193 = scmp.ne.s32.totalorder %s188, %s190
      %p194 = scmp.eq.s32.totalorder %s17, 0
      %p195 = por %p193, %p194
      %p196 = scmp.ne.s32.totalorder %s188, %s190
      %p197 = scmp.eq.s32.totalorder %s22, 1
      %p198 = por %p196, %p197
      %p199 = scmp.ne.s32.totalorder %s190, %s191
      %p200 = scmp.eq.s32.totalorder %s22, 0
      %p201 = por %p199, %p200
      %p202 = scmp.ne.s32.totalorder %s190, %s191
      %p203 = scmp.eq.s32.totalorder %s23, 1
      %p204 = por %p202, %p203
      %p206 = scmp.ne.s32.totalorder %s191, %s205
      %p207 = scmp.eq.s32.totalorder %s23, 0
      %p208 = por %p206, %p207
      %s210 = sadd.s32 %s209, 1
      %p213 = scmp.eq.s32.totalorder %s17, 1
      %p214 = scmp.ne.s32.totalorder %s209, %s211
      %p215 = scmp.eq.s32.totalorder %s17, 0
      %p216 = por %p214, %p215
      %p217 = scmp.ne.s32.totalorder %s209, %s211
      %p218 = scmp.eq.s32.totalorder %s22, 1
      %p219 = por %p217, %p218
      %p220 = scmp.ne.s32.totalorder %s211, %s212
      %p221 = scmp.eq.s32.totalorder %s22, 0
      %p222 = por %p220, %p221
      %p223 = scmp.ne.s32.totalorder %s211, %s212
      %p224 = scmp.eq.s32.totalorder %s23, 1
      %p225 = por %p223, %p224
      %p227 = scmp.ne.s32.totalorder %s212, %s226
      %p228 = scmp.eq.s32.totalorder %s23, 0
      %p229 = por %p227, %p228
      %s230 = ssub.s32 %s24, %s36
      %s231 = ssub.s32 %s25, %s32
      %s232 = sor.u32 %s230, %s231
      %p233 = scmp.eq.s32.totalorder %s232, 0
      %s235 = sadd.s32 %s234, 1
      %s236 = scalar_select %p233, %s234, %s235
      %p239 = pneg %p233
      %p240 = scmp.eq.s32.totalorder %s17, 1
      %p241 = por %p239, %p240
      %p242 = scmp.ne.s32.totalorder %s234, %s237
      %p243 = scmp.eq.s32.totalorder %s17, 0
      %p244 = por %p242, %p243
      %p245 = scmp.ne.s32.totalorder %s234, %s237
      %p246 = scmp.eq.s32.totalorder %s22, 1
      %p247 = por %p245, %p246
      %p248 = scmp.ne.s32.totalorder %s237, %s238
      %p249 = scmp.eq.s32.totalorder %s22, 0
      %p250 = por %p248, %p249
      %p251 = scmp.ne.s32.totalorder %s237, %s238
      %p252 = scmp.eq.s32.totalorder %s23, 1
      %p253 = por %p251, %p252
      %p255 = scmp.ne.s32.totalorder %s238, %s254
      %p256 = scmp.eq.s32.totalorder %s23, 0
      %p257 = por %p255, %p256
      %p258 = scmp.le.s32.totalorder 1, %s17
      %p259 = scmp.lt.s32.totalorder %s17, 3
      %p260 = pnand %p258, %p259
      %p261 = pneg %p260
      // Predicated region
      $region9: #{tpu_custom_call.1} parent=5 // pred_check
        _
      $region10: #{tpu_custom_call.1} parent=5 // pred_check_branch
        %263 = sbr.rel (%p260) target = $region12
      $region11: #{tpu_custom_call.1} parent=5 // pred_region
        %s264 = ssub.s32 %s17, 1
        // Predicated region
        $region13: #{tpu_custom_call.1} parent=11 // pred_check
          %p265 = pneg %p81
        $region14: #{tpu_custom_call.1} parent=11 // pred_check_branch
          %267 = sbr.rel (%p265) target = $region16
        $region15: #{tpu_custom_call.1} parent=11 // pred_region
          %s268 = smul.u32 4, %s27
          %p269 = scmp.lt.s32.totalorder %s268, 3
          %s270 = scalar_select %p269, %s268, 3
          %s271 = smul.addr %s270, 4
          %s272 = scalar_lea.vmem %s1, %s271
          %s273 = smul.u32 4, %s27
        $region16: #{tpu_custom_call.1} parent=11 // pred_fallthru
          _
        // Predicated region
        $region17: #{tpu_custom_call.1} parent=11 // pred_check
          %p274 = pneg %p107
        $region18: #{tpu_custom_call.1} parent=11 // pred_check_branch
          %276 = sbr.rel (%p274) target = $region20
        $region19: #{tpu_custom_call.1} parent=11 // pred_region
          %s277 = smul.u32 4, %s27
          %p278 = scmp.lt.s32.totalorder %s277, 3
          %s279 = scalar_select %p278, %s277, 3
          %s280 = smul.addr %s279, 8
          %s281 = scalar_lea.vmem %s2, %s280
          %s282 = smul.u32 4, %s27
        $region20: #{tpu_custom_call.1} parent=11 // pred_fallthru
          _
        // Predicated region
        $region21: #{tpu_custom_call.1} parent=11 // pred_check
          %p283 = pneg %p133
        $region22: #{tpu_custom_call.1} parent=11 // pred_check_branch
          %285 = sbr.rel (%p283) target = $region24
        $region23: #{tpu_custom_call.1} parent=11 // pred_region
          %s286 = smul.u32 4, %s27
          %p287 = scmp.lt.s32.totalorder %s286, 3
          %s288 = scalar_select %p287, %s286, 3
          %s289 = smul.addr %s288, 8
          %s290 = scalar_lea.vmem %s3, %s289
          %s291 = smul.u32 4, %s27
        $region24: #{tpu_custom_call.1} parent=11 // pred_fallthru
          _
        // Predicated region
        $region25: #{tpu_custom_call.1} parent=11 // pred_check
          %p292 = pneg %p159
        $region26: #{tpu_custom_call.1} parent=11 // pred_check_branch
          %294 = sbr.rel (%p292) target = $region28
        $region27: #{tpu_custom_call.1} parent=11 // pred_region
          %s295 = smul.u32 4, %s27
          %p296 = scmp.lt.s32.totalorder %s295, 3
          %s297 = scalar_select %p296, %s295, 3
          %s298 = smul.addr %s297, 8
          %s299 = scalar_lea.vmem %s4, %s298
          %s300 = smul.u32 4, %s27
        $region28: #{tpu_custom_call.1} parent=11 // pred_fallthru
          _
        // Predicated region
        $region29: #{tpu_custom_call.1} parent=11 // pred_check
          %p301 = pneg %p180
        $region30: #{tpu_custom_call.1} parent=11 // pred_check_branch
          %303 = sbr.rel (%p301) target = $region32
        $region31: #{tpu_custom_call.1} parent=11 // pred_region
          _
        $region32: #{tpu_custom_call.1} parent=11 // pred_fallthru
          _
        // Predicated region
        $region33: #{tpu_custom_call.1} parent=11 // pred_check
          %p304 = pneg %p201
        $region34: #{tpu_custom_call.1} parent=11 // pred_check_branch
          %306 = sbr.rel (%p304) target = $region36
        $region35: #{tpu_custom_call.1} parent=11 // pred_region
          _
        $region36: #{tpu_custom_call.1} parent=11 // pred_fallthru
          _
        // Predicated region
        $region37: #{tpu_custom_call.1} parent=11 // pred_check
          %p307 = pneg %p222
        $region38: #{tpu_custom_call.1} parent=11 // pred_check_branch
          %309 = sbr.rel (%p307) target = $region40
        $region39: #{tpu_custom_call.1} parent=11 // pred_region
          _
        $region40: #{tpu_custom_call.1} parent=11 // pred_fallthru
          _
      $region12: #{tpu_custom_call.1} parent=5 // pred_fallthru
        _
      %p310 = scmp.lt.s32.totalorder %s17, 2
      // Predicated region
      $region41: #{tpu_custom_call.1} parent=5 // pred_check
        %p311 = pneg %p310
      $region42: #{tpu_custom_call.1} parent=5 // pred_check_branch
        %313 = sbr.rel (%p311) target = $region44
      $region43: #{tpu_custom_call.1} parent=5 // pred_region
        // Predicated region
        $region45: #{tpu_custom_call.1} parent=43 // pred_check
          %p314 = pneg %p49
        $region46: #{tpu_custom_call.1} parent=43 // pred_check_branch
          %316 = sbr.rel (%p314) target = $region48
        $region47: #{tpu_custom_call.1} parent=43 // pred_region
          %p317 = scmp.lt.s32.totalorder %s24, 1
          %s318 = scalar_select %p317, %s24, 1
          %s319 = smul.addr %s318, 4
          %s320 = smul.addr %s319, 2
          %s321 = scalar_lea.vmem %s0, %s320
        $region48: #{tpu_custom_call.1} parent=43 // pred_fallthru
          _
      $region44: #{tpu_custom_call.1} parent=5 // pred_fallthru
        _
      %p322 = scmp.le.s32.totalorder 1, %s17
      %p323 = scmp.lt.s32.totalorder %s17, 3
      %p324 = pnand %p322, %p323
      %p325 = pneg %p324
      // Predicated region
      $region49: #{tpu_custom_call.1} parent=5 // pred_check
        _
      $region50: #{tpu_custom_call.1} parent=5 // pred_check_branch
        %327 = sbr.rel (%p324) target = $region52
      $region51: #{tpu_custom_call.1} parent=5 // pred_region
        %s328 = ssub.s32 %s17, 1
        %p329 = scmp.lt.s32.totalorder %s26, 1
        %s330 = scalar_select %p329, %s26, 1
        %s331 = smul.addr %s330, 4
        %s332 = smul.addr %s331, 2
        %s333 = scalar_lea.vmem %s0, %s332
        %p334 = pneg %p55
        %p335 = pneg %p52
        %s336 = smul.u32 4, %s27
        %p337 = scmp.lt.s32.totalorder %s336, 3
        %s338 = scalar_select %p337, %s336, 3
        %s339 = smul.addr %s338, 4
        %s340 = scalar_lea.vmem %s1, %s339
        %p341 = pneg %p81
        %p342 = pneg %p78
        %s343 = smul.u32 4, %s27
        %p344 = scmp.lt.s32.totalorder %s343, 3
        %s345 = scalar_select %p344, %s343, 3
        %s346 = smul.addr %s345, 8
        %s347 = scalar_lea.vmem %s2, %s346
        %p348 = pneg %p107
        %p349 = pneg %p104
        %s350 = smul.u32 4, %s27
        %p351 = scmp.lt.s32.totalorder %s350, 3
        %s352 = scalar_select %p351, %s350, 3
        %s353 = smul.addr %s352, 8
        %s354 = scalar_lea.vmem %s3, %s353
        %p355 = pneg %p133
        %p356 = pneg %p130
        %s357 = smul.u32 4, %s27
        %p358 = scmp.lt.s32.totalorder %s357, 3
        %s359 = scalar_select %p358, %s357, 3
        %s360 = smul.addr %s359, 8
        %s361 = scalar_lea.vmem %s4, %s360
        %p362 = pneg %p159
        %p363 = pneg %p156
        %p364 = pneg %p180
        %p365 = pneg %p177
        %p366 = pneg %p201
        %p367 = pneg %p198
        %p368 = pneg %p222
        %p369 = pneg %p219
        %p370 = pneg %p250
        %p371 = pneg %p247
        %s372 = sand.u32 %s237, 1
        %s373 = scalar_lea.sflag [#allocation4], %s372
        %s374 = sand.u32 %s237, 1
        %s375 = smul.addr %s374, 96
        %s376 = scalar_lea.vmem [#allocation3], %s375
        %p377 = scmp.lt.s32.totalorder %s26, 1
        %s378 = scalar_select %p377, %s26, 1
        %s379 = smul.addr %s378, 4
        %s380 = smul.addr %s379, 2
        %s381 = scalar_lea.vmem %s0, %s380
        %s382 = smul.u32 4, %s27
        %p383 = scmp.lt.s32.totalorder %s382, 3
        %s384 = scalar_select %p383, %s382, 3
        %s385 = smul.addr %s384, 4
        %s386 = scalar_lea.vmem %s1, %s385
        %s387 = smul.u32 4, %s27
        %s388 = smul.u32 4, %s27
        %p389 = scmp.lt.s32.totalorder %s388, 3
        %s390 = scalar_select %p389, %s388, 3
        %s391 = smul.addr %s390, 8
        %s392 = scalar_lea.vmem %s2, %s391
        %s393 = smul.u32 4, %s27
        %s394 = smul.u32 4, %s27
        %p395 = scmp.lt.s32.totalorder %s394, 3
        %s396 = scalar_select %p395, %s394, 3
        %s397 = smul.addr %s396, 8
        %s398 = scalar_lea.vmem %s3, %s397
        %s399 = smul.u32 4, %s27
        %s400 = smul.u32 4, %s27
        %p401 = scmp.lt.s32.totalorder %s400, 3
        %s402 = scalar_select %p401, %s400, 3
        %s403 = smul.addr %s402, 8
        %s404 = scalar_lea.vmem %s4, %s403
        %s405 = smul.u32 4, %s27
        %s406 = smul.u32 4, %s27
        %v408 = vld [vmem:[%s386] sm:$0xf]
        %v409 = vld [vmem:[%s386 + $0x4] sm:$0xf]
        %v410 = vld [vmem:[%s386 + $0x8] sm:$0xf]
        %v411 = vld [vmem:[%s386 + $0xc] sm:$0xf]
        %v412 = vld [vmem:[%s7] sm:$0x7]
        %v413 = vld [vmem:[%s392] sm:$0xff]
        %v414 = vld [vmem:[%s392 + $0x8] sm:$0xff]
        %v415 = vld [vmem:[%s392 + $0x10] sm:$0xff]
        %v416 = vld [vmem:[%s392 + $0x18] sm:$0xff]
        %v417 = vld [vmem:[%s398] sm:$0xff]
        %v418 = vld [vmem:[%s398 + $0x8] sm:$0xff]
        %v419 = vld [vmem:[%s398 + $0x10] sm:$0xff]
        %v420 = vld [vmem:[%s398 + $0x18] sm:$0xff]
        %v421 = vld [vmem:[%s404] sm:$0xff]
        %v422 = vld [vmem:[%s404 + $0x8] sm:$0xff]
        %v423 = vld [vmem:[%s404 + $0x10] sm:$0xff]
        %v424 = vld [vmem:[%s404 + $0x18] sm:$0xff]
        %v425 = vld [vmem:[%s5] sm:$0xff]
        %v426 = vld [vmem:[%s5 + $0x8] sm:$0xff]
        %v427 = vld [vmem:[%s6] sm:$0xff]
        %v428 = vld [vmem:[%s6 + $0x8] sm:$0xff]
        %v429 = vld [vmem:[%s6 + $0x10] sm:$0xff]
        %v430 = vld [vmem:[%s6 + $0x18] sm:$0xff]
        %v431 = vlaneseq
        %v432 = vand.u32 %v431, 127
        %v433 = vld [vmem:[%s381] sm:$0x3f]
        %v435 = vcombine.high %v433, %v433
        %v437 = vunpack.c.l.s4 1983009808
        %v438 = vunpack.c.0.s8 %v437
        %v439 = vlaneseq
        %v440 = vshrl.u32 %v439, 7
        %v441 = vsub.s32 %v438, %v440
        %v442 = vrot.slane %v433, %v441
        %v444 = vunpack.c.l.s4 1983009808
        %v445 = vunpack.c.0.s8 %v444
        %v446 = vlaneseq
        %v447 = vshrl.u32 %v446, 7
        %v448 = vsub.s32 %v445, %v447
        %v449 = vrot.slane %v435, %v448
        %452 = vst [vmem:[#allocation2] sm:$0x33] %v442
        %453 = vst [vmem:[#allocation2 + $0x8] sm:$0x3] %v449
        %v454 = vld [vmem:[%s381] sm:$0xff]
        %v456 = vcombine.low %v454, %v454
        %v458 = vunpack.c.l.s4 1983009808
        %v459 = vunpack.c.0.s8 %v458
        %v460 = vlaneseq
        %v461 = vshrl.u32 %v460, 7
        %v462 = vsub.s32 %v459, %v461
        %v463 = vrot.slane %v456, %v462
        %v465 = vunpack.c.l.s4 1983009808
        %v466 = vunpack.c.0.s8 %v465
        %v467 = vlaneseq
        %v468 = vshrl.u32 %v467, 7
        %v469 = vsub.s32 %v466, %v468
        %v470 = vrot.slane %v454, %v469
        %471 = vrot.lane.b32.xlu0 %v463, 127
        %v472 = vpop.permute.xlu0 %471
        %473 = vrot.lane.b32.xlu0 %v470, 127
        %v474 = vpop.permute.xlu0 %473
        %v475 = vrot.slane %v472, 4
        %v476 = vrot.slane %v474, 4
        %vm477 = vcmask 1043456
        %v478 = vsel %vm477, %v475, %v476
        %vm479 = vcmask 1039360
        %v480 = vsel %vm479, %v472, %v478
        %v481 = vsel %vm479, %v474, %v476
        %484 = vst [vmem:[#allocation2] sm:$0xcc] %v480
        %485 = vst [vmem:[#allocation2 + $0x8] sm:$0xc] %v481
        %v486 = vld [vmem:[%s381] sm:$0xff]
        %v488 = vcombine.high %v486, %v486
        %v490 = vunpack.c.l.s4 1983009808
        %v491 = vunpack.c.0.s8 %v490
        %v492 = vlaneseq
        %v493 = vshrl.u32 %v492, 7
        %v494 = vsub.s32 %v491, %v493
        %v495 = vrot.slane %v486, %v494
        %v497 = vunpack.c.l.s4 1983009808
        %v498 = vunpack.c.0.s8 %v497
        %v499 = vlaneseq
        %v500 = vshrl.u32 %v499, 7
        %v501 = vsub.s32 %v498, %v500
        %v502 = vrot.slane %v488, %v501
        %503 = vrot.lane.b32.xlu0 %v495, 126
        %v504 = vpop.permute.xlu0 %503
        %505 = vrot.lane.b32.xlu0 %v502, 126
        %v506 = vpop.permute.xlu0 %505
        %v507 = vrot.slane %v504, 4
        %v508 = vrot.slane %v506, 4
        %v509 = vsel %vm477, %v507, %v508
        %vm510 = vcmask 1031168
        %v511 = vsel %vm510, %v504, %v509
        %v512 = vsel %vm510, %v506, %v508
        %515 = vst [vmem:[#allocation2 + $0xc] sm:$0x33] %v511
        %516 = vst [vmem:[#allocation2 + $0x14] sm:$0x3] %v512
        %v517 = vld [vmem:[%s381] sm:$0xff]
        %v519 = vcombine.low %v517, %v517
        %v521 = vunpack.c.l.s4 1983009808
        %v522 = vunpack.c.0.s8 %v521
        %v523 = vlaneseq
        %v524 = vshrl.u32 %v523, 7
        %v525 = vsub.s32 %v522, %v524
        %v526 = vrot.slane %v519, %v525
        %v528 = vunpack.c.l.s4 1983009808
        %v529 = vunpack.c.0.s8 %v528
        %v530 = vlaneseq
        %v531 = vshrl.u32 %v530, 7
        %v532 = vsub.s32 %v529, %v531
        %v533 = vrot.slane %v517, %v532
        %534 = vrot.lane.b32.xlu0 %v526, 110
        %v535 = vpop.permute.xlu0 %534
        %536 = vrot.lane.b32.xlu0 %v533, 110
        %v537 = vpop.permute.xlu0 %536
        %v538 = vrot.slane %v535, 4
        %v539 = vrot.slane %v537, 4
        %v540 = vsel %vm477, %v538, %v539
        %vm541 = vcmask 900096
        %v542 = vsel %vm541, %v535, %v540
        %v543 = vsel %vm541, %v537, %v539
        %546 = vst [vmem:[#allocation2 + $0xc] sm:$0xcc] %v542
        %547 = vst [vmem:[#allocation2 + $0x14] sm:$0xc] %v543
        %v548 = vld [vmem:[%s381] sm:$0xff]
        %v550 = vcombine.high %v548, %v548
        %v552 = vunpack.c.l.s4 1983009808
        %v553 = vunpack.c.0.s8 %v552
        %v554 = vlaneseq
        %v555 = vshrl.u32 %v554, 7
        %v556 = vsub.s32 %v553, %v555
        %v557 = vrot.slane %v548, %v556
        %v559 = vunpack.c.l.s4 1983009808
        %v560 = vunpack.c.0.s8 %v559
        %v561 = vlaneseq
        %v562 = vshrl.u32 %v561, 7
        %v563 = vsub.s32 %v560, %v562
        %v564 = vrot.slane %v550, %v563
        %565 = vrot.lane.b32.xlu0 %v557, 109
        %v566 = vpop.permute.xlu0 %565
        %567 = vrot.lane.b32.xlu0 %v564, 109
        %v568 = vpop.permute.xlu0 %567
        %v569 = vrot.slane %v566, 4
        %v570 = vrot.slane %v568, 4
        %v571 = vsel %vm477, %v569, %v570
        %vm572 = vcmask 891904
        %v573 = vsel %vm572, %v566, %v571
        %v574 = vsel %vm572, %v568, %v570
        %577 = vst [vmem:[#allocation2 + $0x18] sm:$0x33] %v573
        %578 = vst [vmem:[#allocation2 + $0x20] sm:$0x3] %v574
        %v579 = vld [vmem:[%s381] sm:$0xff]
        %v581 = vcombine.low %v579, %v579
        %v583 = vunpack.c.l.s4 1983009808
        %v584 = vunpack.c.0.s8 %v583
        %v585 = vlaneseq
        %v586 = vshrl.u32 %v585, 7
        %v587 = vsub.s32 %v584, %v586
        %v588 = vrot.slane %v581, %v587
        %v590 = vunpack.c.l.s4 1983009808
        %v591 = vunpack.c.0.s8 %v590
        %v592 = vlaneseq
        %v593 = vshrl.u32 %v592, 7
        %v594 = vsub.s32 %v591, %v593
        %v595 = vrot.slane %v579, %v594
        %596 = vrot.lane.b32.xlu0 %v588, 108
        %v597 = vpop.permute.xlu0 %596
        %598 = vrot.lane.b32.xlu0 %v595, 108
        %v599 = vpop.permute.xlu0 %598
        %v600 = vrot.slane %v597, 4
        %v601 = vrot.slane %v599, 4
        %v602 = vsel %vm477, %v600, %v601
        %vm603 = vcmask 883712
        %v604 = vsel %vm603, %v597, %v602
        %v605 = vsel %vm603, %v599, %v601
        %608 = vst [vmem:[#allocation2 + $0x18] sm:$0xcc] %v604
        %609 = vst [vmem:[#allocation2 + $0x20] sm:$0xc] %v605
        %v610 = vld [vmem:[%s381] sm:$0xff]
        %v612 = vcombine.high %v610, %v610
        %v614 = vunpack.c.l.s4 1983009808
        %v615 = vunpack.c.0.s8 %v614
        %v616 = vlaneseq
        %v617 = vshrl.u32 %v616, 7
        %v618 = vsub.s32 %v615, %v617
        %v619 = vrot.slane %v610, %v618
        %v621 = vunpack.c.l.s4 1983009808
        %v622 = vunpack.c.0.s8 %v621
        %v623 = vlaneseq
        %v624 = vshrl.u32 %v623, 7
        %v625 = vsub.s32 %v622, %v624
        %v626 = vrot.slane %v612, %v625
        %627 = vrot.lane.b32.xlu0 %v619, 92
        %v628 = vpop.permute.xlu0 %627
        %629 = vrot.lane.b32.xlu0 %v626, 92
        %v630 = vpop.permute.xlu0 %629
        %v631 = vrot.slane %v628, 4
        %v632 = vrot.slane %v630, 4
        %v633 = vsel %vm477, %v631, %v632
        %vm634 = vcmask 752640
        %v635 = vsel %vm634, %v628, %v633
        %v636 = vsel %vm634, %v630, %v632
        %639 = vst [vmem:[#allocation2 + $0x24] sm:$0x33] %v635
        %640 = vst [vmem:[#allocation2 + $0x2c] sm:$0x3] %v636
        %v641 = vld [vmem:[%s381] sm:$0xff]
        %v643 = vcombine.low %v641, %v641
        %v645 = vunpack.c.l.s4 1983009808
        %v646 = vunpack.c.0.s8 %v645
        %v647 = vlaneseq
        %v648 = vshrl.u32 %v647, 7
        %v649 = vsub.s32 %v646, %v648
        %v650 = vrot.slane %v643, %v649
        %v652 = vunpack.c.l.s4 1983009808
        %v653 = vunpack.c.0.s8 %v652
        %v654 = vlaneseq
        %v655 = vshrl.u32 %v654, 7
        %v656 = vsub.s32 %v653, %v655
        %v657 = vrot.slane %v641, %v656
        %658 = vrot.lane.b32.xlu0 %v650, 91
        %v659 = vpop.permute.xlu0 %658
        %660 = vrot.lane.b32.xlu0 %v657, 91
        %v661 = vpop.permute.xlu0 %660
        %v662 = vrot.slane %v659, 4
        %v663 = vrot.slane %v661, 4
        %v664 = vsel %vm477, %v662, %v663
        %vm665 = vcmask 744448
        %v666 = vsel %vm665, %v659, %v664
        %v667 = vsel %vm665, %v661, %v663
        %670 = vst [vmem:[#allocation2 + $0x24] sm:$0xcc] %v666
        %671 = vst [vmem:[#allocation2 + $0x2c] sm:$0xc] %v667
        %v672 = vld [vmem:[%s381] sm:$0xff]
        %v674 = vcombine.high %v672, %v672
        %v676 = vunpack.c.l.s4 1983009808
        %v677 = vunpack.c.0.s8 %v676
        %v678 = vlaneseq
        %v679 = vshrl.u32 %v678, 7
        %v680 = vsub.s32 %v677, %v679
        %v681 = vrot.slane %v672, %v680
        %v683 = vunpack.c.l.s4 1983009808
        %v684 = vunpack.c.0.s8 %v683
        %v685 = vlaneseq
        %v686 = vshrl.u32 %v685, 7
        %v687 = vsub.s32 %v684, %v686
        %v688 = vrot.slane %v674, %v687
        %689 = vrot.lane.b32.xlu0 %v681, 90
        %v690 = vpop.permute.xlu0 %689
        %691 = vrot.lane.b32.xlu0 %v688, 90
        %v692 = vpop.permute.xlu0 %691
        %v693 = vrot.slane %v690, 4
        %v694 = vrot.slane %v692, 4
        %v695 = vsel %vm477, %v693, %v694
        %vm696 = vcmask 736256
        %v697 = vsel %vm696, %v690, %v695
        %v698 = vsel %vm696, %v692, %v694
        %701 = vst [vmem:[#allocation2 + $0x30] sm:$0x33] %v697
        %702 = vst [vmem:[#allocation2 + $0x38] sm:$0x3] %v698
        %v703 = vld [vmem:[#allocation2] sm:$0xff]
        %v704 = vld [vmem:[#allocation2 + $0x8] sm:$0xf]
        %v705 = vld [vmem:[#allocation2 + $0xc] sm:$0xff]
        %v706 = vld [vmem:[#allocation2 + $0x14] sm:$0xf]
        %v707 = vld [vmem:[#allocation2 + $0x18] sm:$0xff]
        %v708 = vld [vmem:[#allocation2 + $0x20] sm:$0xf]
        %v709 = vld [vmem:[#allocation2 + $0x24] sm:$0xff]
        %v710 = vld [vmem:[#allocation2 + $0x2c] sm:$0xf]
        %v711 = vld [vmem:[#allocation2 + $0x30] sm:$0x33]
        %v712 = vld [vmem:[#allocation2 + $0x38] sm:$0x3]
        %v717 = vunpack.c.l.b16 %v408
        %v718 = vunpack.c.l.b16 %v409
        %v719 = vunpack.c.l.b16 %v410
        %v720 = vunpack.c.l.b16 %v411
        %v721 = vpack.c.b16 %v718, %v717
        %v722 = vpack.c.b16 %v720, %v719
        %v733 = vunpack.c.l.b16 %v703
        %v734 = vunpack.c.h.b16 %v703
        %v735 = vunpack.c.l.b16 %v704
        %v736 = vunpack.c.l.b16 %v705
        %v737 = vunpack.c.h.b16 %v705
        %v738 = vunpack.c.l.b16 %v706
        %v739 = vunpack.c.l.b16 %v707
        %v740 = vunpack.c.h.b16 %v707
        %v741 = vunpack.c.l.b16 %v708
        %v742 = vunpack.c.l.b16 %v709
        %v743 = vunpack.c.h.b16 %v709
        %v744 = vunpack.c.l.b16 %v710
        %v745 = vunpack.c.l.b16 %v711
        %v746 = vunpack.c.h.b16 %v711
        %v747 = vunpack.c.l.b16 %v712
        %v748 = vpack.c.b16 %v736, %v733
        %v749 = vpack.c.b16 %v737, %v734
        %v750 = vpack.c.b16 %v738, %v735
        %v751 = vpack.c.b16 %v742, %v739
        %v752 = vpack.c.b16 %v743, %v740
        %v753 = vpack.c.b16 %v744, %v741
        %v754 = vpack.c.b16 %v745, %v745
        %v755 = vpack.c.b16 %v746, %v746
        %v756 = vpack.c.b16 %v747, %v747
        %vm763 = vcmask 293888
        %v765 = vsel %vm763, %v721, 0
        %v768 = vsel %vm763, %v722, 0
        %vm770 = vcmask 1041408
        %v772 = vsel %vm770, %v754, 0
        %v775 = vsel %vm770, %v755, 0
        %v778 = vsel %vm770, %v756, 0
        %780 = vmatprep.subr.bf16.mxu0 %v749
        %781 = vmatpush1.bf16.msra.mxu0 %v748
        %782 = vmatprep.subr.bf16.mxu0 %v752
        %783 = vmatpush1.bf16.msra.mxu0 %v751
        %784 = vmatprep.subr.bf16.mxu0 %v775
        %785 = vmatpush1.bf16.msra.mxu0 %v772
        %786 = vmatprep.subr.bf16.mxu0 0
        %787 = vmatpush1.bf16.msra.mxu0 0
        %788 = vmatprep.subr.bf16.mxu0 0
        %789 = vmatpush1.bf16.msra.mxu0 0
        %790 = vmatprep.subr.bf16.mxu0 0
        %791 = vmatpush1.bf16.msra.mxu0 0
        %792 = vmatprep.subr.bf16.mxu0 0
        %793 = vmatpush1.bf16.msra.mxu0 0
        %794 = vmatprep.subr.bf16.mxu0 0
        %795 = vmatpush1.bf16.msra.mxu0 0
        %796 = vmatprep.subr.bf16.mxu0 0
        %797 = vmatpush1.bf16.msra.mxu0 0
        %798 = vmatprep.subr.bf16.mxu0 0
        %799 = vmatpush1.bf16.msra.mxu0 0
        %800 = vmatprep.subr.bf16.mxu0 0
        %801 = vmatpush1.bf16.msra.mxu0 0
        %802 = vmatprep.subr.bf16.mxu0 0
        %803 = vmatpush1.bf16.msra.mxu0 0
        %804 = vmatprep.subr.bf16.mxu0 0
        %805 = vmatpush1.bf16.msra.mxu0 0
        %806 = vmatprep.subr.bf16.mxu0 0
        %807 = vmatpush1.bf16.msra.mxu0 0
        %808 = vmatprep.subr.bf16.mxu0 0
        %809 = vmatpush1.bf16.msra.mxu0 0
        %810 = vmatprep.subr.bf16.mxu0 0
        %811 = vmatpush1.bf16.msra.mxu0 0
        %812 = vmatprep.mubr.bf16.mxu0 0
        %813 = vmatmul.mubr.bf16.gmra.mrb[0].mxu0 %v765
        %v814 = vpop.f32.mrb[0].mxu0
        %v815 = vadd.f32 0.0, %v814
        %v816 = vpop.f32.mrb[0].mxu0
        %v817 = vadd.f32 0.0, %v816
        %v818 = vpop.f32.mrb[0].mxu0
        %v819 = vadd.f32 0.0, %v818
        %v820 = vpop.f32.mrb[0].mxu0
        %v821 = vadd.f32 0.0, %v820
        %822 = vmatprep.mubr.bf16.mxu0 0
        %823 = vmatmul.mubr.bf16.gmra.mrb[0].mxu0 %v768
        %v824 = vpop.f32.mrb[0].mxu0
        %v825 = vadd.f32 0.0, %v824
        %v826 = vpop.f32.mrb[0].mxu0
        %v827 = vadd.f32 0.0, %v826
        %v828 = vpop.f32.mrb[0].mxu0
        %v829 = vadd.f32 0.0, %v828
        %v830 = vpop.f32.mrb[0].mxu0
        %v831 = vadd.f32 0.0, %v830
        %832 = vdwg.mxu0
        %833 = vmatprep.subr.bf16.mxu0 0
        %834 = vmatpush1.bf16.msra.mxu0 %v750
        %835 = vmatprep.subr.bf16.mxu0 0
        %836 = vmatpush1.bf16.msra.mxu0 %v753
        %837 = vmatprep.subr.bf16.mxu0 0
        %838 = vmatpush1.bf16.msra.mxu0 %v778
        %839 = vmatprep.subr.bf16.mxu0 0
        %840 = vmatpush1.bf16.msra.mxu0 0
        %841 = vmatprep.subr.bf16.mxu0 0
        %842 = vmatpush1.bf16.msra.mxu0 0
        %843 = vmatprep.subr.bf16.mxu0 0
        %844 = vmatpush1.bf16.msra.mxu0 0
        %845 = vmatprep.subr.bf16.mxu0 0
        %846 = vmatpush1.bf16.msra.mxu0 0
        %847 = vmatprep.subr.bf16.mxu0 0
        %848 = vmatpush1.bf16.msra.mxu0 0
        %849 = vmatprep.subr.bf16.mxu0 0
        %850 = vmatpush1.bf16.msra.mxu0 0
        %851 = vmatprep.subr.bf16.mxu0 0
        %852 = vmatpush1.bf16.msra.mxu0 0
        %853 = vmatprep.subr.bf16.mxu0 0
        %854 = vmatpush1.bf16.msra.mxu0 0
        %855 = vmatprep.subr.bf16.mxu0 0
        %856 = vmatpush1.bf16.msra.mxu0 0
        %857 = vmatprep.subr.bf16.mxu0 0
        %858 = vmatpush1.bf16.msra.mxu0 0
        %859 = vmatprep.subr.bf16.mxu0 0
        %860 = vmatpush1.bf16.msra.mxu0 0
        %861 = vmatprep.subr.bf16.mxu0 0
        %862 = vmatpush1.bf16.msra.mxu0 0
        %863 = vmatprep.subr.bf16.mxu0 0
        %864 = vmatpush1.bf16.msra.mxu0 0
        %865 = vmatprep.mubr.bf16.mxu0 0
        %866 = vmatmul.mubr.bf16.gmra.mrb[0].mxu0 %v765
        %v867 = vpop.f32.mrb[0].mxu0
        %v868 = vadd.f32 0.0, %v867
        %v869 = vpop.f32.mrb[0].mxu0
        %v870 = vpop.f32.mrb[0].mxu0
        %v871 = vadd.f32 0.0, %v870
        %v872 = vpop.f32.mrb[0].mxu0
        %873 = vmatprep.mubr.bf16.mxu0 0
        %874 = vmatmul.mubr.bf16.gmra.mrb[0].mxu0 %v768
        %v875 = vpop.f32.mrb[0].mxu0
        %v876 = vadd.f32 0.0, %v875
        %v877 = vpop.f32.mrb[0].mxu0
        %v878 = vpop.f32.mrb[0].mxu0
        %v879 = vadd.f32 0.0, %v878
        %v880 = vpop.f32.mrb[0].mxu0
        %881 = vdwg.mxu0
        %v883 = vlaneseq
        %v884 = vshrl.u32 %v883, 7
        %v885 = vsub.s32 0, %v884
        %v886 = vrot.slane %v412, %v885
        %v887 = vlaneseq
        %v888 = vshrl.u32 %v887, 7
        %v889 = vsub.s32 1, %v888
        %v890 = vrot.slane %v412, %v889
        %v891 = vlaneseq
        %v892 = vshrl.u32 %v891, 7
        %v893 = vsub.s32 2, %v892
        %v894 = vrot.slane %v412, %v893
        %v898 = vmul.f32 %v815, %v886
        %v899 = vmul.f32 %v817, %v890
        %v900 = vmul.f32 %v868, %v894
        %v901 = vmul.f32 %v819, %v886
        %v902 = vmul.f32 %v821, %v890
        %v903 = vmul.f32 %v871, %v894
        %v904 = vmul.f32 %v825, %v886
        %v905 = vmul.f32 %v827, %v890
        %v906 = vmul.f32 %v876, %v894
        %v907 = vmul.f32 %v829, %v886
        %v908 = vmul.f32 %v831, %v890
        %v909 = vmul.f32 %v879, %v894
        %v910 = vadd.f32 %v898, %v899
        %v911 = vadd.f32 %v910, %v900
        %912 = vadd.xlane.f32.xlu0 %v911
        %v913 = vpop.xlane.xlu0 %912
        %v914 = vadd.f32 %v901, %v902
        %v915 = vadd.f32 %v914, %v903
        %916 = vadd.xlane.f32.xlu0 %v915
        %v917 = vpop.xlane.xlu0 %916
        %v918 = vadd.f32 %v904, %v905
        %v919 = vadd.f32 %v918, %v906
        %920 = vadd.xlane.f32.xlu0 %v919
        %v921 = vpop.xlane.xlu0 %920
        %v922 = vadd.f32 %v907, %v908
        %v923 = vadd.f32 %v922, %v909
        %924 = vadd.xlane.f32.xlu0 %v923
        %v925 = vpop.xlane.xlu0 %924
        %v926 = vmul.f32 %v898, %v815
        %v927 = vmul.f32 %v899, %v817
        %v928 = vmul.f32 %v900, %v868
        %v929 = vmul.f32 %v901, %v819
        %v930 = vmul.f32 %v902, %v821
        %v931 = vmul.f32 %v903, %v871
        %v932 = vmul.f32 %v904, %v825
        %v933 = vmul.f32 %v905, %v827
        %v934 = vmul.f32 %v906, %v876
        %v935 = vmul.f32 %v907, %v829
        %v936 = vmul.f32 %v908, %v831
        %v937 = vmul.f32 %v909, %v879
        %v938 = vadd.f32 %v926, %v927
        %v939 = vadd.f32 %v938, %v928
        %940 = vadd.xlane.f32.xlu0 %v939
        %v941 = vpop.xlane.xlu0 %940
        %v942 = vadd.f32 %v929, %v930
        %v943 = vadd.f32 %v942, %v931
        %944 = vadd.xlane.f32.xlu0 %v943
        %v945 = vpop.xlane.xlu0 %944
        %v946 = vadd.f32 %v932, %v933
        %v947 = vadd.f32 %v946, %v934
        %948 = vadd.xlane.f32.xlu0 %v947
        %v949 = vpop.xlane.xlu0 %948
        %v950 = vadd.f32 %v935, %v936
        %v951 = vadd.f32 %v950, %v937
        %952 = vadd.xlane.f32.xlu0 %v951
        %v953 = vpop.xlane.xlu0 %952
        %v954 = vmul.f32 %v413, 256.0
        %v955 = vmul.f32 %v414, 256.0
        %v956 = vmul.f32 %v415, 256.0
        %v957 = vmul.f32 %v416, 256.0
        %v958 = vadd.f32 %v913, %v954
        %v959 = vadd.f32 %v917, %v955
        %v960 = vadd.f32 %v921, %v956
        %v961 = vadd.f32 %v925, %v957
        %v962 = vmul.f32 %v413, 2.0
        %v963 = vmul.f32 %v414, 2.0
        %v964 = vmul.f32 %v415, 2.0
        %v965 = vmul.f32 %v416, 2.0
        %v966 = vmul.f32 %v962, %v913
        %v967 = vmul.f32 %v963, %v917
        %v968 = vmul.f32 %v964, %v921
        %v969 = vmul.f32 %v965, %v925
        %v970 = vadd.f32 %v941, %v966
        %v971 = vadd.f32 %v945, %v967
        %v972 = vadd.f32 %v949, %v968
        %v973 = vadd.f32 %v953, %v969
        %v974 = vmul.f32 %v413, %v413
        %v975 = vmul.f32 %v414, %v414
        %v976 = vmul.f32 %v415, %v415
        %v977 = vmul.f32 %v416, %v416
        %v978 = vmul.f32 %v974, 256.0
        %v979 = vmul.f32 %v975, 256.0
        %v980 = vmul.f32 %v976, 256.0
        %v981 = vmul.f32 %v977, 256.0
        %v982 = vadd.f32 %v970, %v978
        %v983 = vadd.f32 %v971, %v979
        %v984 = vadd.f32 %v972, %v980
        %v985 = vadd.f32 %v973, %v981
        %vm986 = vcmp.eq.s32.totalorder %v432, 0
        %988 = vset.pattern.permute.xlu0 0
        %989 = vperm.xlu0 %988, %v958
        %v990 = vpop.permute.xlu0 %989
        %993 = vset.pattern.permute.xlu0 0
        %994 = vperm.xlu0 %993, %v959
        %v995 = vpop.permute.xlu0 %994
        %998 = vset.pattern.permute.xlu0 0
        %999 = vperm.xlu0 %998, %v960
        %v1000 = vpop.permute.xlu0 %999
        %1003 = vset.pattern.permute.xlu0 0
        %1004 = vperm.xlu0 %1003, %v961
        %v1005 = vpop.permute.xlu0 %1004
        %1008 = vset.pattern.permute.xlu0 0
        %1009 = vperm.xlu0 %1008, %v982
        %v1010 = vpop.permute.xlu0 %1009
        %1013 = vset.pattern.permute.xlu0 0
        %1014 = vperm.xlu0 %1013, %v983
        %v1015 = vpop.permute.xlu0 %1014
        %1018 = vset.pattern.permute.xlu0 0
        %1019 = vperm.xlu0 %1018, %v984
        %v1020 = vpop.permute.xlu0 %1019
        %1023 = vset.pattern.permute.xlu0 0
        %1024 = vperm.xlu0 %1023, %v985
        %v1025 = vpop.permute.xlu0 %1024
        %v1027 = vsel %vm986, %v990, %v1010
        %v1028 = vsel %vm986, %v995, %v1015
        %v1029 = vsel %vm986, %v1000, %v1020
        %v1030 = vsel %vm986, %v1005, %v1025
        %vm1031 = vcmask 261120
        %v1033 = vsel %vm1031, %v425, 0
        %v1036 = vsel %vm1031, %v426, 0
        %1038 = vmatprep.subr.mxu0 0.0
        %1039 = vmatpush1.msra.mxu0 %v1027
        %1040 = vmatprep.subr.mxu0 0.0
        %1041 = vmatpush1.msra.mxu0 %v1028
        %1042 = vmatprep.subr.mxu0 0.0
        %1043 = vmatpush1.msra.mxu0 %v1029
        %1044 = vmatprep.subr.mxu0 0.0
        %1045 = vmatpush1.msra.mxu0 %v1030
        %1046 = vmatprep.subr.mxu0 0.0
        %1047 = vmatpush1.msra.mxu0 0.0
        %1048 = vmatprep.subr.mxu0 0.0
        %1049 = vmatpush1.msra.mxu0 0.0
        %1050 = vmatprep.subr.mxu0 0.0
        %1051 = vmatpush1.msra.mxu0 0.0
        %1052 = vmatprep.subr.mxu0 0.0
        %1053 = vmatpush1.msra.mxu0 0.0
        %1054 = vmatprep.subr.mxu0 0.0
        %1055 = vmatpush1.msra.mxu0 0.0
        %1056 = vmatprep.subr.mxu0 0.0
        %1057 = vmatpush1.msra.mxu0 0.0
        %1058 = vmatprep.subr.mxu0 0.0
        %1059 = vmatpush1.msra.mxu0 0.0
        %1060 = vmatprep.subr.mxu0 0.0
        %1061 = vmatpush1.msra.mxu0 0.0
        %1062 = vmatprep.subr.mxu0 0.0
        %1063 = vmatpush1.msra.mxu0 0.0
        %1064 = vmatprep.subr.mxu0 0.0
        %1065 = vmatpush1.msra.mxu0 0.0
        %1066 = vmatprep.subr.mxu0 0.0
        %1067 = vmatpush1.msra.mxu0 0.0
        %1068 = vmatprep.subr.mxu0 0.0
        %1069 = vmatpush1.msra.mxu0 0.0
        %1070 = vmatprep.subr.mxu0 0.0
        %1071 = vmatpush1.msra.mxu0 0.0
        %1072 = vmatprep.subr.mxu0 0.0
        %1073 = vmatpush1.msra.mxu0 0.0
        %1074 = vmatprep.subr.mxu0 0.0
        %1075 = vmatpush1.msra.mxu0 0.0
        %1076 = vmatprep.subr.mxu0 0.0
        %1077 = vmatpush1.msra.mxu0 0.0
        %1078 = vmatprep.subr.mxu0 0.0
        %1079 = vmatpush1.msra.mxu0 0.0
        %1080 = vmatprep.subr.mxu0 0.0
        %1081 = vmatpush1.msra.mxu0 0.0
        %1082 = vmatprep.subr.mxu0 0.0
        %1083 = vmatpush1.msra.mxu0 0.0
        %1084 = vmatprep.subr.mxu0 0.0
        %1085 = vmatpush1.msra.mxu0 0.0
        %1086 = vmatprep.subr.mxu0 0.0
        %1087 = vmatpush1.msra.mxu0 0.0
        %1088 = vmatprep.subr.mxu0 0.0
        %1089 = vmatpush1.msra.mxu0 0.0
        %1090 = vmatprep.subr.mxu0 0.0
        %1091 = vmatpush1.msra.mxu0 0.0
        %1092 = vmatprep.subr.mxu0 0.0
        %1093 = vmatpush1.msra.mxu0 0.0
        %1094 = vmatprep.subr.mxu0 0.0
        %1095 = vmatpush1.msra.mxu0 0.0
        %1096 = vmatprep.subr.mxu0 0.0
        %1097 = vmatpush1.msra.mxu0 0.0
        %1098 = vmatprep.subr.mxu0 0.0
        %1099 = vmatpush1.msra.mxu0 0.0
        %1100 = vmatprep.subr.mxu0 0.0
        %1101 = vmatpush1.msra.mxu0 0.0
        %1102 = vmatprep.mubr.f32.mxu0 0.0
        %1103 = vmatmul.mubr.f32.gmra.mrb[0].mxu0 %v1033
        %v1104 = vpop.f32.mrb[0].mxu0
        %v1105 = vadd.f32 0.0, %v1104
        %v1106 = vpop.f32.mrb[0].mxu0
        %1107 = vmatprep.mubr.f32.mxu0 0.0
        %1108 = vmatmul.mubr.f32.gmra.mrb[0].mxu0 %v1036
        %v1109 = vpop.f32.mrb[0].mxu0
        %v1110 = vadd.f32 0.0, %v1109
        %v1111 = vpop.f32.mrb[0].mxu0
        %1112 = vdwg.mxu0
        %v1113 = vmul.f32 %v1105, 0.001953125
        %v1114 = vmul.f32 %v1110, 0.001953125
        %v1115 = vmul.f32 %v1113, %v1113
        %v1116 = vmul.f32 %v1114, %v1114
        %1119 = vrot.lane.b32.xlu0 %v1115, 1
        %v1120 = vpop.permute.xlu0 %1119
        %1121 = vrot.lane.b32.xlu0 %v1116, 1
        %v1122 = vpop.permute.xlu0 %1121
        %v1125 = vsub.f32 %v1113, %v1120
        %v1126 = vsub.f32 %v1114, %v1122
        %v1127 = vmax.f32 %v1125, 0.0
        %v1128 = vmax.f32 %v1126, 0.0
        %v1129 = vadd.f32 %v1127, 1e-05
        %v1130 = vadd.f32 %v1128, 1e-05
        %v1131 = vrsqrt.pop %v1129
        %v1132 = vrsqrt.pop %v1130
        %1134 = vset.pattern.permute.xlu0 0
        %1135 = vperm.xlu0 %1134, %v1113
        %v1136 = vpop.permute.xlu0 %1135
        %1139 = vset.pattern.permute.xlu0 0
        %1140 = vperm.xlu0 %1139, %v1114
        %v1141 = vpop.permute.xlu0 %1140
        %1144 = vset.pattern.permute.xlu0 1
        %1145 = vperm.xlu0 %1144, %v1131
        %v1146 = vpop.permute.xlu0 %1145
        %1149 = vset.pattern.permute.xlu0 1
        %1150 = vperm.xlu0 %1149, %v1132
        %v1151 = vpop.permute.xlu0 %1150
        %v1153 = vsel %vm986, %v1136, %v1146
        %v1154 = vsel %vm986, %v1141, %v1151
        %vm1155 = vcmask 130048
        %v1157 = vsel %vm1155, %v427, 0
        %v1160 = vsel %vm1155, %v428, 0
        %v1163 = vsel %vm1155, %v429, 0
        %v1166 = vsel %vm1155, %v430, 0
        %1168 = vmatprep.subr.mxu0 0.0
        %1169 = vmatpush1.msra.mxu0 %v1153
        %1170 = vmatprep.subr.mxu0 0.0
        %1171 = vmatpush1.msra.mxu0 %v1154
        %1172 = vmatprep.subr.mxu0 0.0
        %1173 = vmatpush1.msra.mxu0 0.0
        %1174 = vmatprep.subr.mxu0 0.0
        %1175 = vmatpush1.msra.mxu0 0.0
        %1176 = vmatprep.subr.mxu0 0.0
        %1177 = vmatpush1.msra.mxu0 0.0
        %1178 = vmatprep.subr.mxu0 0.0
        %1179 = vmatpush1.msra.mxu0 0.0
        %1180 = vmatprep.subr.mxu0 0.0
        %1181 = vmatpush1.msra.mxu0 0.0
        %1182 = vmatprep.subr.mxu0 0.0
        %1183 = vmatpush1.msra.mxu0 0.0
        %1184 = vmatprep.subr.mxu0 0.0
        %1185 = vmatpush1.msra.mxu0 0.0
        %1186 = vmatprep.subr.mxu0 0.0
        %1187 = vmatpush1.msra.mxu0 0.0
        %1188 = vmatprep.subr.mxu0 0.0
        %1189 = vmatpush1.msra.mxu0 0.0
        %1190 = vmatprep.subr.mxu0 0.0
        %1191 = vmatpush1.msra.mxu0 0.0
        %1192 = vmatprep.subr.mxu0 0.0
        %1193 = vmatpush1.msra.mxu0 0.0
        %1194 = vmatprep.subr.mxu0 0.0
        %1195 = vmatpush1.msra.mxu0 0.0
        %1196 = vmatprep.subr.mxu0 0.0
        %1197 = vmatpush1.msra.mxu0 0.0
        %1198 = vmatprep.subr.mxu0 0.0
        %1199 = vmatpush1.msra.mxu0 0.0
        %1200 = vmatprep.subr.mxu0 0.0
        %1201 = vmatpush1.msra.mxu0 0.0
        %1202 = vmatprep.subr.mxu0 0.0
        %1203 = vmatpush1.msra.mxu0 0.0
        %1204 = vmatprep.subr.mxu0 0.0
        %1205 = vmatpush1.msra.mxu0 0.0
        %1206 = vmatprep.subr.mxu0 0.0
        %1207 = vmatpush1.msra.mxu0 0.0
        %1208 = vmatprep.subr.mxu0 0.0
        %1209 = vmatpush1.msra.mxu0 0.0
        %1210 = vmatprep.subr.mxu0 0.0
        %1211 = vmatpush1.msra.mxu0 0.0
        %1212 = vmatprep.subr.mxu0 0.0
        %1213 = vmatpush1.msra.mxu0 0.0
        %1214 = vmatprep.subr.mxu0 0.0
        %1215 = vmatpush1.msra.mxu0 0.0
        %1216 = vmatprep.subr.mxu0 0.0
        %1217 = vmatpush1.msra.mxu0 0.0
        %1218 = vmatprep.subr.mxu0 0.0
        %1219 = vmatpush1.msra.mxu0 0.0
        %1220 = vmatprep.subr.mxu0 0.0
        %1221 = vmatpush1.msra.mxu0 0.0
        %1222 = vmatprep.subr.mxu0 0.0
        %1223 = vmatpush1.msra.mxu0 0.0
        %1224 = vmatprep.subr.mxu0 0.0
        %1225 = vmatpush1.msra.mxu0 0.0
        %1226 = vmatprep.subr.mxu0 0.0
        %1227 = vmatpush1.msra.mxu0 0.0
        %1228 = vmatprep.subr.mxu0 0.0
        %1229 = vmatpush1.msra.mxu0 0.0
        %1230 = vmatprep.subr.mxu0 0.0
        %1231 = vmatpush1.msra.mxu0 0.0
        %1232 = vmatprep.mubr.f32.mxu0 0.0
        %1233 = vmatmul.mubr.f32.gmra.mrb[0].mxu0 %v1157
        %v1234 = vpop.f32.mrb[0].mxu0
        %v1235 = vadd.f32 0.0, %v1234
        %v1236 = vpop.f32.mrb[0].mxu0
        %1237 = vmatprep.mubr.f32.mxu0 0.0
        %1238 = vmatmul.mubr.f32.gmra.mrb[0].mxu0 %v1160
        %v1239 = vpop.f32.mrb[0].mxu0
        %v1240 = vadd.f32 0.0, %v1239
        %v1241 = vpop.f32.mrb[0].mxu0
        %1242 = vmatprep.mubr.f32.mxu0 0.0
        %1243 = vmatmul.mubr.f32.gmra.mrb[0].mxu0 %v1163
        %v1244 = vpop.f32.mrb[0].mxu0
        %v1245 = vadd.f32 0.0, %v1244
        %v1246 = vpop.f32.mrb[0].mxu0
        %1247 = vmatprep.mubr.f32.mxu0 0.0
        %1248 = vmatmul.mubr.f32.gmra.mrb[0].mxu0 %v1166
        %v1249 = vpop.f32.mrb[0].mxu0
        %v1250 = vadd.f32 0.0, %v1249
        %v1251 = vpop.f32.mrb[0].mxu0
        %1252 = vdwg.mxu0
        %1257 = vrot.lane.b32.xlu0 %v417, 1
        %v1258 = vpop.permute.xlu0 %1257
        %1259 = vrot.lane.b32.xlu0 %v418, 1
        %v1260 = vpop.permute.xlu0 %1259
        %1261 = vrot.lane.b32.xlu0 %v419, 1
        %v1262 = vpop.permute.xlu0 %1261
        %1263 = vrot.lane.b32.xlu0 %v420, 1
        %v1264 = vpop.permute.xlu0 %1263
        %v1269 = vmul.f32 %v1235, %v1258
        %v1270 = vmul.f32 %v1240, %v1260
        %v1271 = vmul.f32 %v1245, %v1262
        %v1272 = vmul.f32 %v1250, %v1264
        %v1273 = vsub.f32 %v413, %v1235
        %v1274 = vsub.f32 %v414, %v1240
        %v1275 = vsub.f32 %v415, %v1245
        %v1276 = vsub.f32 %v416, %v1250
        %1281 = vrot.lane.b32.xlu0 %v1269, 127
        %v1282 = vpop.permute.xlu0 %1281
        %1283 = vrot.lane.b32.xlu0 %v1270, 127
        %v1284 = vpop.permute.xlu0 %1283
        %1285 = vrot.lane.b32.xlu0 %v1271, 127
        %v1286 = vpop.permute.xlu0 %1285
        %1287 = vrot.lane.b32.xlu0 %v1272, 127
        %v1288 = vpop.permute.xlu0 %1287
        %v1293 = vmul.f32 %v1273, %v1282
        %v1294 = vmul.f32 %v1274, %v1284
        %v1295 = vmul.f32 %v1275, %v1286
        %v1296 = vmul.f32 %v1276, %v1288
        %v1297 = vadd.f32 %v1293, %v421
        %v1298 = vadd.f32 %v1294, %v422
        %v1299 = vadd.f32 %v1295, %v423
        %v1300 = vadd.f32 %v1296, %v424
        %1301 = vset.pattern.permute.xlu0 1
        %1302 = vperm.xlu0 %1301, %v1269
        %v1303 = vpop.permute.xlu0 %1302
        %1305 = vset.pattern.permute.xlu0 1
        %1306 = vperm.xlu0 %1305, %v1270
        %v1307 = vpop.permute.xlu0 %1306
        %1309 = vset.pattern.permute.xlu0 1
        %1310 = vperm.xlu0 %1309, %v1271
        %v1311 = vpop.permute.xlu0 %1310
        %1313 = vset.pattern.permute.xlu0 1
        %1314 = vperm.xlu0 %1313, %v1272
        %v1315 = vpop.permute.xlu0 %1314
        %v1317 = vmul.f32 %v815, %v1303
        %v1318 = vmul.f32 %v817, %v1303
        %v1319 = vmul.f32 %v868, %v1303
        %v1320 = vmul.f32 %v819, %v1307
        %v1321 = vmul.f32 %v821, %v1307
        %v1322 = vmul.f32 %v871, %v1307
        %v1323 = vmul.f32 %v825, %v1311
        %v1324 = vmul.f32 %v827, %v1311
        %v1325 = vmul.f32 %v876, %v1311
        %v1326 = vmul.f32 %v829, %v1315
        %v1327 = vmul.f32 %v831, %v1315
        %v1328 = vmul.f32 %v879, %v1315
        %1330 = vset.pattern.permute.xlu0 0
        %1331 = vperm.xlu0 %1330, %v1297
        %v1332 = vpop.permute.xlu0 %1331
        %1335 = vset.pattern.permute.xlu0 0
        %1336 = vperm.xlu0 %1335, %v1298
        %v1337 = vpop.permute.xlu0 %1336
        %1340 = vset.pattern.permute.xlu0 0
        %1341 = vperm.xlu0 %1340, %v1299
        %v1342 = vpop.permute.xlu0 %1341
        %1345 = vset.pattern.permute.xlu0 0
        %1346 = vperm.xlu0 %1345, %v1300
        %v1347 = vpop.permute.xlu0 %1346
        %v1349 = vadd.f32 %v1317, %v1332
        %v1350 = vadd.f32 %v1318, %v1332
        %v1351 = vadd.f32 %v1319, %v1332
        %v1352 = vadd.f32 %v1320, %v1337
        %v1353 = vadd.f32 %v1321, %v1337
        %v1354 = vadd.f32 %v1322, %v1337
        %v1355 = vadd.f32 %v1323, %v1342
        %v1356 = vadd.f32 %v1324, %v1342
        %v1357 = vadd.f32 %v1325, %v1342
        %v1358 = vadd.f32 %v1326, %v1347
        %v1359 = vadd.f32 %v1327, %v1347
        %v1360 = vadd.f32 %v1328, %v1347
        %vm1361 = vcmp.gt.f32.partialorder %v1349, 0.0
        %vm1362 = vcmp.gt.f32.partialorder %v1350, 0.0
        %vm1363 = vcmp.gt.f32.partialorder %v1351, 0.0
        %vm1364 = vcmp.gt.f32.partialorder %v1352, 0.0
        %vm1365 = vcmp.gt.f32.partialorder %v1353, 0.0
        %vm1366 = vcmp.gt.f32.partialorder %v1354, 0.0
        %vm1367 = vcmp.gt.f32.partialorder %v1355, 0.0
        %vm1368 = vcmp.gt.f32.partialorder %v1356, 0.0
        %vm1369 = vcmp.gt.f32.partialorder %v1357, 0.0
        %vm1370 = vcmp.gt.f32.partialorder %v1358, 0.0
        %vm1371 = vcmp.gt.f32.partialorder %v1359, 0.0
        %vm1372 = vcmp.gt.f32.partialorder %v1360, 0.0
        %v1373 = vmul.f32 %v1349, 0.2
        %v1374 = vmul.f32 %v1350, 0.2
        %v1375 = vmul.f32 %v1351, 0.2
        %v1376 = vmul.f32 %v1352, 0.2
        %v1377 = vmul.f32 %v1353, 0.2
        %v1378 = vmul.f32 %v1354, 0.2
        %v1379 = vmul.f32 %v1355, 0.2
        %v1380 = vmul.f32 %v1356, 0.2
        %v1381 = vmul.f32 %v1357, 0.2
        %v1382 = vmul.f32 %v1358, 0.2
        %v1383 = vmul.f32 %v1359, 0.2
        %v1384 = vmul.f32 %v1360, 0.2
        %v1385 = vsel %vm1361, %v1349, %v1373
        %v1386 = vsel %vm1362, %v1350, %v1374
        %v1387 = vsel %vm1363, %v1351, %v1375
        %v1388 = vsel %vm1364, %v1352, %v1376
        %v1389 = vsel %vm1365, %v1353, %v1377
        %v1390 = vsel %vm1366, %v1354, %v1378
        %v1391 = vsel %vm1367, %v1355, %v1379
        %v1392 = vsel %vm1368, %v1356, %v1380
        %v1393 = vsel %vm1369, %v1357, %v1381
        %v1394 = vsel %vm1370, %v1358, %v1382
        %v1395 = vsel %vm1371, %v1359, %v1383
        %v1396 = vsel %vm1372, %v1360, %v1384
        %1397 = vst [vmem:[%s376] sm:$0xff] %v1385
        %1398 = vst [vmem:[%s376 + $0x8] sm:$0xff] %v1386
        %1399 = vst [vmem:[%s376 + $0x10] sm:$0xff] %v1387
        %1400 = vst [vmem:[%s376 + $0x18] sm:$0xff] %v1388
        %1401 = vst [vmem:[%s376 + $0x20] sm:$0xff] %v1389
        %1402 = vst [vmem:[%s376 + $0x28] sm:$0xff] %v1390
        %1403 = vst [vmem:[%s376 + $0x30] sm:$0xff] %v1391
        %1404 = vst [vmem:[%s376 + $0x38] sm:$0xff] %v1392
        %1405 = vst [vmem:[%s376 + $0x40] sm:$0xff] %v1393
        %1406 = vst [vmem:[%s376 + $0x48] sm:$0xff] %v1394
        %1407 = vst [vmem:[%s376 + $0x50] sm:$0xff] %v1395
        %1408 = vst [vmem:[%s376 + $0x58] sm:$0xff] %v1396
        %s1409 = sand.u32 %s237, 1
        %s1410 = scalar_lea.sflag [#allocation4], %s1409
        %s1411 = sand.u32 %s237, 1
        %s1412 = smul.addr %s1411, 96
        %s1413 = scalar_lea.vmem [#allocation3], %s1412
        // Predicated region
        $region53: #{tpu_custom_call.1} parent=51 // pred_check
          %p1414 = pneg %p247
        $region54: #{tpu_custom_call.1} parent=51 // pred_check_branch
          %1416 = sbr.rel (%p1414) target = $region56
        $region55: #{tpu_custom_call.1} parent=51 // pred_region
          %s1417 = smul.u32 4, %s27
          %s1419 = ssub.s32 1536, 1536
          %1420 = vsyncadd %s1410, %s1419
          %s1421 = smul.addr %s1417, 3
          %s1422 = smul.addr %s26, 12
          %s1423 = sadd.s32 %s1421, %s1422
          %s1424 = smul.addr %s1423, 128
          %s1425 = scalar_lea.hbm %s8, %s1424
          %s1426 = sshll.u32 %s1413, 4
          %s1427 = int_to_ptr.vmem [resolvable:$true] %s1426
          %1432 = dma.vmem_to_hbm [thread:$0]  %s1427, 1536, %s1425, %s1410, 384, 384, 24
        $region56: #{tpu_custom_call.1} parent=51 // pred_fallthru
          _
      $region52: #{tpu_custom_call.1} parent=5 // pred_fallthru
        _
      %p1433 = scmp.le.s32.totalorder 2, %s17
      // Predicated region
      $region57: #{tpu_custom_call.1} parent=5 // pred_check
        %p1434 = pneg %p1433
      $region58: #{tpu_custom_call.1} parent=5 // pred_check_branch
        %1436 = sbr.rel (%p1434) target = $region60
      $region59: #{tpu_custom_call.1} parent=5 // pred_region
        %s1437 = ssub.s32 %s17, 2
        // Predicated region
        $region61: #{tpu_custom_call.1} parent=59 // pred_check
          %p1438 = pneg %p253
        $region62: #{tpu_custom_call.1} parent=59 // pred_check_branch
          %1440 = sbr.rel (%p1438) target = $region64
        $region63: #{tpu_custom_call.1} parent=59 // pred_region
          %s1441 = sand.u32 %s238, 1
          %s1442 = scalar_lea.sflag [#allocation4], %s1441
          %s1443 = sand.u32 %s238, 1
          %s1444 = smul.addr %s1443, 96
          %s1445 = scalar_lea.vmem [#allocation3], %s1444
          %1446 = dma.done %s1442, 1536
        $region64: #{tpu_custom_call.1} parent=59 // pred_fallthru
          _
      $region60: #{tpu_custom_call.1} parent=5 // pred_fallthru
        _
    $region6: #{tpu_custom_call.1} parent=1 // loop_footer
      %s21 = sadd.s32 1, %s17
    $region7: #{tpu_custom_call.1} parent=1 // loop_footer_branch
      %16 = sbr.rel target = $region3
    $region8: #{tpu_custom_call.1} parent=1 // loop_exit
      _
    %1447 = vsyncpa [#allocation4], 1
    %s1448 = scalar_lea.sflag [#allocation4], 1
    %1449 = vsyncpa %s1448, 1

</llo_original>
